<compile_context>
chip_gen: v5e
topology: v5e:2x2
jax: 0.10.0
libtpu: 0.0.40
codegen_flags: <defaults>
</compile_context>

<pallas_src>
import functools

import jax
import jax.numpy as jnp
from jax.experimental import pallas as pl
from jax.experimental.pallas import tpu as pltpu

EPS = 1e-5


# ------------------------------ kernel helpers -------------------------------

def _dw3x3_s2_bn(a, b, d, e, w, scale, bias):
    """Depthwise 3x3, stride 2, pad 1 + folded BN affine, on parity planes.

    a,b,d,e : (ho, wo, c) f32 parity planes of the full-resolution input:
        a[i,j] = x[2i, 2j]    b[i,j] = x[2i, 2j+1]
        d[i,j] = x[2i+1, 2j]  e[i,j] = x[2i+1, 2j+1]
    w       : (3, 3, c) depthwise taps
    scale/bias : broadcastable (., c) folded BN affine
    """
    ho, wo, c = a.shape
    zrow = jnp.zeros((1, wo, c), jnp.float32)
    zcol = jnp.zeros((ho, 1, c), jnp.float32)
    # shifted planes (zero padding on the top row / left column only; with
    # k=3, s=2, p=1 and even H,W the bottom/right padding is never read)
    b_l = jnp.concatenate([zcol, b[:, :wo - 1, :]], axis=1)      # b[i, j-1]
    e_l = jnp.concatenate([zcol, e[:, :wo - 1, :]], axis=1)      # e[i, j-1]
    d_u = jnp.concatenate([zrow, d[:ho - 1, :, :]], axis=0)      # d[i-1, j]
    e_u = jnp.concatenate([zrow, e[:ho - 1, :, :]], axis=0)      # e[i-1, j]
    e_ul = jnp.concatenate([zcol, e_u[:, :wo - 1, :]], axis=1)   # e[i-1, j-1]

    w = w.astype(jnp.float32)
    acc = (a * w[1, 1]
           + b_l * w[1, 0] + b * w[1, 2]
           + d_u * w[0, 1] + d * w[2, 1]
           + e_ul * w[0, 0] + e_u * w[0, 2]
           + e_l * w[2, 0] + e * w[2, 2])
    return acc * scale + bias


def _fused_kernel(x_ref,
                  dw1w_ref, dw1s_ref, dw1b_ref,
                  pw1w_ref, pw1s_ref, pw1b_ref,
                  dw2w_ref, dw2s_ref, dw2b_ref,
                  wf1_ref, wf2_ref, fs_ref, fb_ref,
                  o_ref, *, ho, wo, cin, ch):
    # full tile for this image: (ho, 2, wo, 2*cin); parity planes are dense
    # value slices (stride-2 was removed by the outside reshape).
    xt = x_ref[...].astype(jnp.float32)
    a = xt[:, 0, :, 0:cin]            # x[2i,   2j  ]
    b = xt[:, 0, :, cin:2 * cin]      # x[2i,   2j+1]
    d = xt[:, 1, :, 0:cin]            # x[2i+1, 2j  ]
    e = xt[:, 1, :, cin:2 * cin]      # x[2i+1, 2j+1]

    # ---------------- branch 1: dw3x3 s2 + BN ---------------------------------
    y1 = _dw3x3_s2_bn(a, b, d, e, dw1w_ref[...],
                      dw1s_ref[...], dw1b_ref[...])              # (ho, wo, cin)

    # ---------------- branch 2: 1x1 + BN + SiLU, then dw3x3 s2 + BN ----------
    # The 1x1 conv commutes with the spatial parity split, so it is applied to
    # each parity plane (covering every full-res pixel exactly once).
    w_pw1 = pw1w_ref[...].astype(jnp.float32)
    s_pw1 = pw1s_ref[...]
    b_pw1 = pw1b_ref[...]

    def pw1(z):                                   # (ho, wo, cin) -> (ho, wo, ch)
        y = jnp.dot(z.reshape(ho * wo, cin), w_pw1,
                    preferred_element_type=jnp.float32)
        y = y * s_pw1 + b_pw1
        y = y * jax.nn.sigmoid(y)                 # SiLU
        return y.reshape(ho, wo, ch)

    y2 = _dw3x3_s2_bn(pw1(a), pw1(b), pw1(d), pw1(e), dw2w_ref[...],
                      dw2s_ref[...], dw2b_ref[...])              # (ho, wo, ch)

    # -------- fused final 1x1 + BN + SiLU of BOTH branches --------------------
    # concat + ChannelShuffle(2) are folded into interleaved weight columns, so
    # this produces the final lane-dense output slab directly.
    y = jnp.dot(y1.reshape(ho * wo, cin), wf1_ref[...].astype(jnp.float32),
                preferred_element_type=jnp.float32)
    y = y + jnp.dot(y2.reshape(ho * wo, ch), wf2_ref[...].astype(jnp.float32),
                    preferred_element_type=jnp.float32)
    y = y * fs_ref[...] + fb_ref[...]
    y = y * jax.nn.sigmoid(y)                      # SiLU
    o_ref[...] = y.reshape(ho, wo, 2 * ch).astype(o_ref.dtype)


# --------------------------- parameters / folding ----------------------------

def _fold_bn(gamma, beta, conv_bias, mean=0.0, var=1.0):
    scale = gamma / jnp.sqrt(var + EPS)
    bias = beta + (conv_bias - mean) * scale
    return scale, bias


def init_params(key, cin, cout):
    ch = cout // 2
    ks = jax.random.split(key, 20)

    def nrm(k, shape, s):
        return s * jax.random.normal(k, shape, jnp.float32)

    p = {
        # branch1: dw3x3(in->in, s2) -> BN -> (1x1 in->ch + BN + SiLU)
        "b1_dw_w": nrm(ks[0], (3, 3, cin), 0.2),
        "b1_dw_b": nrm(ks[1], (cin,), 0.05),
        "b1_bn1_g": 1.0 + nrm(ks[2], (cin,), 0.1),
        "b1_bn1_b": nrm(ks[3], (cin,), 0.05),
        "b1_pw_w": nrm(ks[4], (cin, ch), 0.2),
        "b1_pw_b": nrm(ks[5], (ch,), 0.05),
        "b1_bn2_g": 1.0 + nrm(ks[6], (ch,), 0.1),
        "b1_bn2_b": nrm(ks[7], (ch,), 0.05),
        # branch2: (1x1 in->ch + BN + SiLU) -> dw3x3(ch->ch, s2) -> BN
        #          -> (1x1 ch->ch + BN + SiLU)
        "b2_pw1_w": nrm(ks[8], (cin, ch), 0.2),
        "b2_pw1_b": nrm(ks[9], (ch,), 0.05),
        "b2_bn1_g": 1.0 + nrm(ks[10], (ch,), 0.1),
        "b2_bn1_b": nrm(ks[11], (ch,), 0.05),
        "b2_dw_w": nrm(ks[12], (3, 3, ch), 0.2),
        "b2_dw_b": nrm(ks[13], (ch,), 0.05),
        "b2_bn2_g": 1.0 + nrm(ks[14], (ch,), 0.1),
        "b2_bn2_b": nrm(ks[15], (ch,), 0.05),
        "b2_pw2_w": nrm(ks[16], (ch, ch), 0.2),
        "b2_pw2_b": nrm(ks[17], (ch,), 0.05),
        "b2_bn3_g": 1.0 + nrm(ks[18], (ch,), 0.1),
        "b2_bn3_b": nrm(ks[19], (ch,), 0.05),
    }
    return p


# -------------------------------- forward ------------------------------------

def residual_downsample(x_nchw, p):
    """ResidualDownsample forward (eval-mode BN).  NCHW in / NCHW out."""
    n, cin, h, w = x_nchw.shape
    assert h % 2 == 0 and w % 2 == 0, "even spatial dims expected (k3,s2,p1)"
    ch = p["b1_pw_w"].shape[1]
    cout = 2 * ch
    ho, wo = h // 2, w // 2

    # NCHW -> NHWC (boundary glue), then split H into (Ho, 2) and fold the W
    # column parity into the channel axis: (N, Ho, 2, Wo, 2*Cin).  Both
    # reshapes are free (contiguous); no stride-2 reads remain in the kernel.
    x = jnp.transpose(x_nchw, (0, 2, 3, 1))
    xr = x.reshape(n, ho, 2, wo, 2 * cin)

    # fold eval-mode BN + preceding conv bias into per-channel affine
    dw1_s, dw1_b = _fold_bn(p["b1_bn1_g"], p["b1_bn1_b"], p["b1_dw_b"])
    pw1_s, pw1_b = _fold_bn(p["b2_bn1_g"], p["b2_bn1_b"], p["b2_pw1_b"])
    dw2_s, dw2_b = _fold_bn(p["b2_bn2_g"], p["b2_bn2_b"], p["b2_dw_b"])
    f1_s, f1_b = _fold_bn(p["b1_bn2_g"], p["b1_bn2_b"], p["b1_pw_b"])
    f2_s, f2_b = _fold_bn(p["b2_bn3_g"], p["b2_bn3_b"], p["b2_pw2_b"])

    # fold concat + ChannelShuffle(groups=2) into interleaved final 1x1 weights:
    # output channel 2c <- branch1 channel c, 2c+1 <- branch2 channel c.
    w1 = p["b1_pw_w"]                       # (cin, ch)
    w2 = p["b2_pw2_w"]                      # (ch, ch)
    wf1 = jnp.stack([w1, jnp.zeros_like(w1)], axis=2).reshape(cin, cout)
    wf2 = jnp.stack([jnp.zeros_like(w2), w2], axis=2).reshape(ch, cout)
    fs = jnp.stack([f1_s, f2_s], axis=1).reshape(1, cout)
    fb = jnp.stack([f1_b, f2_b], axis=1).reshape(1, cout)

    kernel = functools.partial(_fused_kernel, ho=ho, wo=wo, cin=cin, ch=ch)

    def full(shape):
        return pl.BlockSpec(shape, lambda b, _s=shape: (0,) * len(_s))

    out = pl.pallas_call(
        kernel,
        out_shape=jax.ShapeDtypeStruct((n, ho, wo, cout), x.dtype),
        grid=(n,),
        in_specs=[
            # one full image per grid step; batch dim squeezed out of the ref
            pl.BlockSpec((None, ho, 2, wo, 2 * cin),
                         lambda b: (b, 0, 0, 0, 0)),
            full((3, 3, cin)),              # branch1 dw weights
            full((1, cin)),                 # branch1 dw+BN scale
            full((1, cin)),                 # branch1 dw+BN bias
            full((cin, ch)),                # branch2 first 1x1 weights
            full((1, ch)),                  # branch2 1x1+BN scale
            full((1, ch)),                  # branch2 1x1+BN bias
            full((3, 3, ch)),               # branch2 dw weights
            full((1, ch)),                  # branch2 dw+BN scale
            full((1, ch)),                  # branch2 dw+BN bias
            full((cin, cout)),              # interleaved final 1x1 (branch1)
            full((ch, cout)),               # interleaved final 1x1 (branch2)
            full((1, cout)),                # interleaved final scale
            full((1, cout)),                # interleaved final bias
        ],
        out_specs=pl.BlockSpec((None, ho, wo, cout), lambda b: (b, 0, 0, 0)),
        compiler_params=pltpu.CompilerParams(
            dimension_semantics=("parallel",)),
    )(xr,
      p["b1_dw_w"], dw1_s.reshape(1, cin), dw1_b.reshape(1, cin),
      p["b2_pw1_w"], pw1_s.reshape(1, ch), pw1_b.reshape(1, ch),
      p["b2_dw_w"], dw2_s.reshape(1, ch), dw2_b.reshape(1, ch),
      wf1, wf2, fs, fb)

    return jnp.transpose(out, (0, 3, 1, 2))     # NHWC -> NCHW


# ----------------------------- pure-JAX reference ----------------------------

def _ref_forward(x_nchw, p):
    x = jnp.transpose(x_nchw, (0, 2, 3, 1))

    def dw_ref(xx, w, scale, bias):
        c = xx.shape[-1]
        wf = w.reshape(3, 3, 1, c)
        y = jax.lax.conv_general_dilated(
            xx, wf, window_strides=(2, 2), padding=((1, 1), (1, 1)),
            dimension_numbers=("NHWC", "HWIO", "NHWC"), feature_group_count=c)
        return y * scale + bias

    def pw_ref(xx, w, scale, bias):
        y = jnp.einsum("nhwc,cd->nhwd", xx, w) * scale + bias
        return y * jax.nn.sigmoid(y)

    s, b = _fold_bn(p["b1_bn1_g"], p["b1_bn1_b"], p["b1_dw_b"])
    t1 = dw_ref(x, p["b1_dw_w"], s, b)
    s, b = _fold_bn(p["b1_bn2_g"], p["b1_bn2_b"], p["b1_pw_b"])
    y1 = pw_ref(t1, p["b1_pw_w"], s, b)

    s, b = _fold_bn(p["b2_bn1_g"], p["b2_bn1_b"], p["b2_pw1_b"])
    t2 = pw_ref(x, p["b2_pw1_w"], s, b)
    s, b = _fold_bn(p["b2_bn2_g"], p["b2_bn2_b"], p["b2_dw_b"])
    t2 = dw_ref(t2, p["b2_dw_w"], s, b)
    s, b = _fold_bn(p["b2_bn3_g"], p["b2_bn3_b"], p["b2_pw2_b"])
    y2 = pw_ref(t2, p["b2_pw2_w"], s, b)

    y = jnp.concatenate([y1, y2], axis=-1)
    n, ho, wo, c = y.shape
    y = y.reshape(n, ho, wo, 2, c // 2).transpose(0, 1, 2, 4, 3).reshape(n, ho, wo, c)
    return jnp.transpose(y, (0, 3, 1, 2))


# ----------------------------------- main -------------------------------------

if __name__ == "__main__":
    key = jax.random.PRNGKey(0)
    kx, kp = jax.random.split(key)

    N, Cin, H, W = 2, 4, 16, 16
    Cout = 8

    x = jax.random.normal(kx, (N, Cin, H, W), jnp.float32)
    params = init_params(kp, Cin, Cout)

    out = jax.jit(residual_downsample)(x, params)
    out = jax.block_until_ready(out)
    assert out.shape == (N, Cout, H // 2, W // 2), out.shape

    ref = _ref_forward(x, params)
    err = float(jnp.max(jnp.abs(out - ref)))
    assert jnp.allclose(out, ref, atol=1e-4, rtol=1e-4), f"max abs err {err}"

    print("KERNEL_OK")
</pallas_src>

<mosaic_0001>
module attributes {stable_mosaic.version = 11 : i64} {
  func.func @_fused_kernel(%arg0: i32, %arg1: memref<1x8x2x8x8xf32, #tpu.memory_space<vmem>>, %arg2: memref<3x3x4xf32, #tpu.memory_space<vmem>>, %arg3: memref<1x4xf32, #tpu.memory_space<vmem>>, %arg4: memref<1x4xf32, #tpu.memory_space<vmem>>, %arg5: memref<4x4xf32, #tpu.memory_space<vmem>>, %arg6: memref<1x4xf32, #tpu.memory_space<vmem>>, %arg7: memref<1x4xf32, #tpu.memory_space<vmem>>, %arg8: memref<3x3x4xf32, #tpu.memory_space<vmem>>, %arg9: memref<1x4xf32, #tpu.memory_space<vmem>>, %arg10: memref<1x4xf32, #tpu.memory_space<vmem>>, %arg11: memref<4x8xf32, #tpu.memory_space<vmem>>, %arg12: memref<4x8xf32, #tpu.memory_space<vmem>>, %arg13: memref<1x8xf32, #tpu.memory_space<vmem>>, %arg14: memref<1x8xf32, #tpu.memory_space<vmem>>, %arg15: memref<1x8x8x8xf32, #tpu.memory_space<vmem>>) attributes {dimension_semantics = [#tpu.dimension_semantics<parallel>], iteration_bounds = array<i64: 2>, scalar_prefetch = 0 : i64, scratch_operands = 0 : i64, tpu.core_type = #tpu.core_type<tc>, window_params = [{transform_indices = @transform_0, window_bounds = array<i64: 1, 8, 2, 8, 8>}, {pipeline_mode = #tpu.pipeline_mode<synchronous>, transform_indices = @transform_1, window_bounds = array<i64: 3, 3, 4>}, {pipeline_mode = #tpu.pipeline_mode<synchronous>, transform_indices = @transform_2, window_bounds = array<i64: 1, 4>}, {pipeline_mode = #tpu.pipeline_mode<synchronous>, transform_indices = @transform_3, window_bounds = array<i64: 1, 4>}, {pipeline_mode = #tpu.pipeline_mode<synchronous>, transform_indices = @transform_4, window_bounds = array<i64: 4, 4>}, {pipeline_mode = #tpu.pipeline_mode<synchronous>, transform_indices = @transform_5, window_bounds = array<i64: 1, 4>}, {pipeline_mode = #tpu.pipeline_mode<synchronous>, transform_indices = @transform_6, window_bounds = array<i64: 1, 4>}, {pipeline_mode = #tpu.pipeline_mode<synchronous>, transform_indices = @transform_7, window_bounds = array<i64: 3, 3, 4>}, {pipeline_mode = #tpu.pipeline_mode<synchronous>, transform_indices = @transform_8, window_bounds = array<i64: 1, 4>}, {pipeline_mode = #tpu.pipeline_mode<synchronous>, transform_indices = @transform_9, window_bounds = array<i64: 1, 4>}, {pipeline_mode = #tpu.pipeline_mode<synchronous>, transform_indices = @transform_10, window_bounds = array<i64: 4, 8>}, {pipeline_mode = #tpu.pipeline_mode<synchronous>, transform_indices = @transform_11, window_bounds = array<i64: 4, 8>}, {pipeline_mode = #tpu.pipeline_mode<synchronous>, transform_indices = @transform_12, window_bounds = array<i64: 1, 8>}, {pipeline_mode = #tpu.pipeline_mode<synchronous>, transform_indices = @transform_13, window_bounds = array<i64: 1, 8>}, {transform_indices = @transform_14, window_bounds = array<i64: 1, 8, 8, 8>}]} {
    %c0 = arith.constant 0 : index
    %c0_0 = arith.constant 0 : index
    %c0_1 = arith.constant 0 : index
    %c0_2 = arith.constant 0 : index
    %c0_3 = arith.constant 0 : index
    %0 = vector.load %arg1[%c0, %c0_0, %c0_1, %c0_2, %c0_3] : memref<1x8x2x8x8xf32, #tpu.memory_space<vmem>>, vector<1x8x2x8x8xf32>
    %1 = vector.shape_cast %0 : vector<1x8x2x8x8xf32> to vector<8x2x8x8xf32>
    %2 = vector.extract_strided_slice %1 {offsets = [0, 0, 0, 0], sizes = [8, 1, 8, 4], strides = [1, 1, 1, 1]} : vector<8x2x8x8xf32> to vector<8x1x8x4xf32>
    %3 = vector.shape_cast %2 : vector<8x1x8x4xf32> to vector<8x8x4xf32>
    %4 = vector.extract_strided_slice %1 {offsets = [0, 0, 0, 4], sizes = [8, 1, 8, 4], strides = [1, 1, 1, 1]} : vector<8x2x8x8xf32> to vector<8x1x8x4xf32>
    %5 = vector.shape_cast %4 : vector<8x1x8x4xf32> to vector<8x8x4xf32>
    %6 = vector.extract_strided_slice %1 {offsets = [0, 1, 0, 0], sizes = [8, 1, 8, 4], strides = [1, 1, 1, 1]} : vector<8x2x8x8xf32> to vector<8x1x8x4xf32>
    %7 = vector.shape_cast %6 : vector<8x1x8x4xf32> to vector<8x8x4xf32>
    %8 = vector.extract_strided_slice %1 {offsets = [0, 1, 0, 4], sizes = [8, 1, 8, 4], strides = [1, 1, 1, 1]} : vector<8x2x8x8xf32> to vector<8x1x8x4xf32>
    %9 = vector.shape_cast %8 : vector<8x1x8x4xf32> to vector<8x8x4xf32>
    %c0_4 = arith.constant 0 : index
    %c0_5 = arith.constant 0 : index
    %c0_6 = arith.constant 0 : index
    %10 = vector.load %arg2[%c0_4, %c0_5, %c0_6] : memref<3x3x4xf32, #tpu.memory_space<vmem>>, vector<3x3x4xf32>
    %c0_7 = arith.constant 0 : index
    %c0_8 = arith.constant 0 : index
    %11 = vector.load %arg3[%c0_7, %c0_8] : memref<1x4xf32, #tpu.memory_space<vmem>>, vector<1x4xf32>
    %c0_9 = arith.constant 0 : index
    %c0_10 = arith.constant 0 : index
    %12 = vector.load %arg4[%c0_9, %c0_10] : memref<1x4xf32, #tpu.memory_space<vmem>>, vector<1x4xf32>
    %cst = arith.constant 0.000000e+00 : f32
    %13 = vector.broadcast %cst : f32 to vector<1x8x4xf32>
    %cst_11 = arith.constant 0.000000e+00 : f32
    %14 = vector.broadcast %cst_11 : f32 to vector<8x1x4xf32>
    %15 = vector.extract_strided_slice %5 {offsets = [0, 0, 0], sizes = [8, 7, 4], strides = [1, 1, 1]} : vector<8x8x4xf32> to vector<8x7x4xf32>
    %16 = tpu.concatenate %14, %15 in 1 : vector<8x1x4xf32>, vector<8x7x4xf32> -> vector<8x8x4xf32>
    %17 = vector.extract_strided_slice %9 {offsets = [0, 0, 0], sizes = [8, 7, 4], strides = [1, 1, 1]} : vector<8x8x4xf32> to vector<8x7x4xf32>
    %18 = tpu.concatenate %14, %17 in 1 : vector<8x1x4xf32>, vector<8x7x4xf32> -> vector<8x8x4xf32>
    %19 = vector.extract_strided_slice %7 {offsets = [0, 0, 0], sizes = [7, 8, 4], strides = [1, 1, 1]} : vector<8x8x4xf32> to vector<7x8x4xf32>
    %20 = tpu.concatenate %13, %19 in 0 : vector<1x8x4xf32>, vector<7x8x4xf32> -> vector<8x8x4xf32>
    %21 = vector.extract_strided_slice %9 {offsets = [0, 0, 0], sizes = [7, 8, 4], strides = [1, 1, 1]} : vector<8x8x4xf32> to vector<7x8x4xf32>
    %22 = tpu.concatenate %13, %21 in 0 : vector<1x8x4xf32>, vector<7x8x4xf32> -> vector<8x8x4xf32>
    %23 = vector.extract_strided_slice %22 {offsets = [0, 0, 0], sizes = [8, 7, 4], strides = [1, 1, 1]} : vector<8x8x4xf32> to vector<8x7x4xf32>
    %24 = tpu.concatenate %14, %23 in 1 : vector<8x1x4xf32>, vector<8x7x4xf32> -> vector<8x8x4xf32>
    %25 = vector.extract_strided_slice %10 {offsets = [1, 1, 0], sizes = [1, 1, 4], strides = [1, 1, 1]} : vector<3x3x4xf32> to vector<1x1x4xf32>
    %26 = vector.shape_cast %25 : vector<1x1x4xf32> to vector<4xf32>
    %27 = vector.shape_cast %26 : vector<4xf32> to vector<1x1x4xf32>
    %28 = vector.broadcast %27 : vector<1x1x4xf32> to vector<8x8x4xf32>
    %29 = arith.mulf %3, %28 : vector<8x8x4xf32>
    %30 = vector.extract_strided_slice %10 {offsets = [1, 0, 0], sizes = [1, 1, 4], strides = [1, 1, 1]} : vector<3x3x4xf32> to vector<1x1x4xf32>
    %31 = vector.shape_cast %30 : vector<1x1x4xf32> to vector<4xf32>
    %32 = vector.shape_cast %31 : vector<4xf32> to vector<1x1x4xf32>
    %33 = vector.broadcast %32 : vector<1x1x4xf32> to vector<8x8x4xf32>
    %34 = arith.mulf %16, %33 : vector<8x8x4xf32>
    %35 = arith.addf %29, %34 : vector<8x8x4xf32>
    %36 = vector.extract_strided_slice %10 {offsets = [1, 2, 0], sizes = [1, 1, 4], strides = [1, 1, 1]} : vector<3x3x4xf32> to vector<1x1x4xf32>
    %37 = vector.shape_cast %36 : vector<1x1x4xf32> to vector<4xf32>
    %38 = vector.shape_cast %37 : vector<4xf32> to vector<1x1x4xf32>
    %39 = vector.broadcast %38 : vector<1x1x4xf32> to vector<8x8x4xf32>
    %40 = arith.mulf %5, %39 : vector<8x8x4xf32>
    %41 = arith.addf %35, %40 : vector<8x8x4xf32>
    %42 = vector.extract_strided_slice %10 {offsets = [0, 1, 0], sizes = [1, 1, 4], strides = [1, 1, 1]} : vector<3x3x4xf32> to vector<1x1x4xf32>
    %43 = vector.shape_cast %42 : vector<1x1x4xf32> to vector<4xf32>
    %44 = vector.shape_cast %43 : vector<4xf32> to vector<1x1x4xf32>
    %45 = vector.broadcast %44 : vector<1x1x4xf32> to vector<8x8x4xf32>
    %46 = arith.mulf %20, %45 : vector<8x8x4xf32>
    %47 = arith.addf %41, %46 : vector<8x8x4xf32>
    %48 = vector.extract_strided_slice %10 {offsets = [2, 1, 0], sizes = [1, 1, 4], strides = [1, 1, 1]} : vector<3x3x4xf32> to vector<1x1x4xf32>
    %49 = vector.shape_cast %48 : vector<1x1x4xf32> to vector<4xf32>
    %50 = vector.shape_cast %49 : vector<4xf32> to vector<1x1x4xf32>
    %51 = vector.broadcast %50 : vector<1x1x4xf32> to vector<8x8x4xf32>
    %52 = arith.mulf %7, %51 : vector<8x8x4xf32>
    %53 = arith.addf %47, %52 : vector<8x8x4xf32>
    %54 = vector.extract_strided_slice %10 {offsets = [0, 0, 0], sizes = [1, 1, 4], strides = [1, 1, 1]} : vector<3x3x4xf32> to vector<1x1x4xf32>
    %55 = vector.shape_cast %54 : vector<1x1x4xf32> to vector<4xf32>
    %56 = vector.shape_cast %55 : vector<4xf32> to vector<1x1x4xf32>
    %57 = vector.broadcast %56 : vector<1x1x4xf32> to vector<8x8x4xf32>
    %58 = arith.mulf %24, %57 : vector<8x8x4xf32>
    %59 = arith.addf %53, %58 : vector<8x8x4xf32>
    %60 = vector.extract_strided_slice %10 {offsets = [0, 2, 0], sizes = [1, 1, 4], strides = [1, 1, 1]} : vector<3x3x4xf32> to vector<1x1x4xf32>
    %61 = vector.shape_cast %60 : vector<1x1x4xf32> to vector<4xf32>
    %62 = vector.shape_cast %61 : vector<4xf32> to vector<1x1x4xf32>
    %63 = vector.broadcast %62 : vector<1x1x4xf32> to vector<8x8x4xf32>
    %64 = arith.mulf %22, %63 : vector<8x8x4xf32>
    %65 = arith.addf %59, %64 : vector<8x8x4xf32>
    %66 = vector.extract_strided_slice %10 {offsets = [2, 0, 0], sizes = [1, 1, 4], strides = [1, 1, 1]} : vector<3x3x4xf32> to vector<1x1x4xf32>
    %67 = vector.shape_cast %66 : vector<1x1x4xf32> to vector<4xf32>
    %68 = vector.shape_cast %67 : vector<4xf32> to vector<1x1x4xf32>
    %69 = vector.broadcast %68 : vector<1x1x4xf32> to vector<8x8x4xf32>
    %70 = arith.mulf %18, %69 : vector<8x8x4xf32>
    %71 = arith.addf %65, %70 : vector<8x8x4xf32>
    %72 = vector.extract_strided_slice %10 {offsets = [2, 2, 0], sizes = [1, 1, 4], strides = [1, 1, 1]} : vector<3x3x4xf32> to vector<1x1x4xf32>
    %73 = vector.shape_cast %72 : vector<1x1x4xf32> to vector<4xf32>
    %74 = vector.shape_cast %73 : vector<4xf32> to vector<1x1x4xf32>
    %75 = vector.broadcast %74 : vector<1x1x4xf32> to vector<8x8x4xf32>
    %76 = arith.mulf %9, %75 : vector<8x8x4xf32>
    %77 = arith.addf %71, %76 : vector<8x8x4xf32>
    %78 = vector.shape_cast %11 : vector<1x4xf32> to vector<1x1x4xf32>
    %79 = vector.broadcast %78 : vector<1x1x4xf32> to vector<8x8x4xf32>
    %80 = arith.mulf %77, %79 : vector<8x8x4xf32>
    %81 = vector.shape_cast %12 : vector<1x4xf32> to vector<1x1x4xf32>
    %82 = vector.broadcast %81 : vector<1x1x4xf32> to vector<8x8x4xf32>
    %83 = arith.addf %80, %82 : vector<8x8x4xf32>
    %c0_12 = arith.constant 0 : index
    %c0_13 = arith.constant 0 : index
    %84 = vector.load %arg5[%c0_12, %c0_13] : memref<4x4xf32, #tpu.memory_space<vmem>>, vector<4x4xf32>
    %c0_14 = arith.constant 0 : index
    %c0_15 = arith.constant 0 : index
    %85 = vector.load %arg6[%c0_14, %c0_15] : memref<1x4xf32, #tpu.memory_space<vmem>>, vector<1x4xf32>
    %c0_16 = arith.constant 0 : index
    %c0_17 = arith.constant 0 : index
    %86 = vector.load %arg7[%c0_16, %c0_17] : memref<1x4xf32, #tpu.memory_space<vmem>>, vector<1x4xf32>
    %87 = vector.shape_cast %3 : vector<8x8x4xf32> to vector<64x4xf32>
    %cst_18 = arith.constant dense<0.000000e+00> : vector<64x4xf32>
    %88 = tpu.matmul %87, %84, %cst_18 {dimension_numbers = #tpu.dot_dimension_numbers<[1], [0], [0], [1], [0, 0, 1, 1], [], []>} : vector<64x4xf32>, vector<4x4xf32>, vector<64x4xf32> -> vector<64x4xf32>
    %89 = vector.broadcast %85 : vector<1x4xf32> to vector<64x4xf32>
    %90 = arith.mulf %88, %89 : vector<64x4xf32>
    %91 = vector.broadcast %86 : vector<1x4xf32> to vector<64x4xf32>
    %92 = arith.addf %90, %91 : vector<64x4xf32>
    %93 = arith.negf %92 : vector<64x4xf32>
    %94 = math.exp %93 : vector<64x4xf32>
    %cst_19 = arith.constant 1.000000e+00 : f32
    %95 = vector.broadcast %cst_19 : f32 to vector<64x4xf32>
    %96 = arith.addf %95, %94 : vector<64x4xf32>
    %97 = arith.divf %95, %96 : vector<64x4xf32>
    %98 = arith.mulf %92, %97 : vector<64x4xf32>
    %99 = vector.shape_cast %98 : vector<64x4xf32> to vector<8x8x4xf32>
    %100 = vector.shape_cast %5 : vector<8x8x4xf32> to vector<64x4xf32>
    %cst_20 = arith.constant dense<0.000000e+00> : vector<64x4xf32>
    %101 = tpu.matmul %100, %84, %cst_20 {dimension_numbers = #tpu.dot_dimension_numbers<[1], [0], [0], [1], [0, 0, 1, 1], [], []>} : vector<64x4xf32>, vector<4x4xf32>, vector<64x4xf32> -> vector<64x4xf32>
    %102 = vector.broadcast %85 : vector<1x4xf32> to vector<64x4xf32>
    %103 = arith.mulf %101, %102 : vector<64x4xf32>
    %104 = vector.broadcast %86 : vector<1x4xf32> to vector<64x4xf32>
    %105 = arith.addf %103, %104 : vector<64x4xf32>
    %106 = arith.negf %105 : vector<64x4xf32>
    %107 = math.exp %106 : vector<64x4xf32>
    %cst_21 = arith.constant 1.000000e+00 : f32
    %108 = vector.broadcast %cst_21 : f32 to vector<64x4xf32>
    %109 = arith.addf %108, %107 : vector<64x4xf32>
    %110 = arith.divf %108, %109 : vector<64x4xf32>
    %111 = arith.mulf %105, %110 : vector<64x4xf32>
    %112 = vector.shape_cast %111 : vector<64x4xf32> to vector<8x8x4xf32>
    %113 = vector.shape_cast %7 : vector<8x8x4xf32> to vector<64x4xf32>
    %cst_22 = arith.constant dense<0.000000e+00> : vector<64x4xf32>
    %114 = tpu.matmul %113, %84, %cst_22 {dimension_numbers = #tpu.dot_dimension_numbers<[1], [0], [0], [1], [0, 0, 1, 1], [], []>} : vector<64x4xf32>, vector<4x4xf32>, vector<64x4xf32> -> vector<64x4xf32>
    %115 = vector.broadcast %85 : vector<1x4xf32> to vector<64x4xf32>
    %116 = arith.mulf %114, %115 : vector<64x4xf32>
    %117 = vector.broadcast %86 : vector<1x4xf32> to vector<64x4xf32>
    %118 = arith.addf %116, %117 : vector<64x4xf32>
    %119 = arith.negf %118 : vector<64x4xf32>
    %120 = math.exp %119 : vector<64x4xf32>
    %cst_23 = arith.constant 1.000000e+00 : f32
    %121 = vector.broadcast %cst_23 : f32 to vector<64x4xf32>
    %122 = arith.addf %121, %120 : vector<64x4xf32>
    %123 = arith.divf %121, %122 : vector<64x4xf32>
    %124 = arith.mulf %118, %123 : vector<64x4xf32>
    %125 = vector.shape_cast %124 : vector<64x4xf32> to vector<8x8x4xf32>
    %126 = vector.shape_cast %9 : vector<8x8x4xf32> to vector<64x4xf32>
    %cst_24 = arith.constant dense<0.000000e+00> : vector<64x4xf32>
    %127 = tpu.matmul %126, %84, %cst_24 {dimension_numbers = #tpu.dot_dimension_numbers<[1], [0], [0], [1], [0, 0, 1, 1], [], []>} : vector<64x4xf32>, vector<4x4xf32>, vector<64x4xf32> -> vector<64x4xf32>
    %128 = vector.broadcast %85 : vector<1x4xf32> to vector<64x4xf32>
    %129 = arith.mulf %127, %128 : vector<64x4xf32>
    %130 = vector.broadcast %86 : vector<1x4xf32> to vector<64x4xf32>
    %131 = arith.addf %129, %130 : vector<64x4xf32>
    %132 = arith.negf %131 : vector<64x4xf32>
    %133 = math.exp %132 : vector<64x4xf32>
    %cst_25 = arith.constant 1.000000e+00 : f32
    %134 = vector.broadcast %cst_25 : f32 to vector<64x4xf32>
    %135 = arith.addf %134, %133 : vector<64x4xf32>
    %136 = arith.divf %134, %135 : vector<64x4xf32>
    %137 = arith.mulf %131, %136 : vector<64x4xf32>
    %138 = vector.shape_cast %137 : vector<64x4xf32> to vector<8x8x4xf32>
    %c0_26 = arith.constant 0 : index
    %c0_27 = arith.constant 0 : index
    %c0_28 = arith.constant 0 : index
    %139 = vector.load %arg8[%c0_26, %c0_27, %c0_28] : memref<3x3x4xf32, #tpu.memory_space<vmem>>, vector<3x3x4xf32>
    %c0_29 = arith.constant 0 : index
    %c0_30 = arith.constant 0 : index
    %140 = vector.load %arg9[%c0_29, %c0_30] : memref<1x4xf32, #tpu.memory_space<vmem>>, vector<1x4xf32>
    %c0_31 = arith.constant 0 : index
    %c0_32 = arith.constant 0 : index
    %141 = vector.load %arg10[%c0_31, %c0_32] : memref<1x4xf32, #tpu.memory_space<vmem>>, vector<1x4xf32>
    %cst_33 = arith.constant 0.000000e+00 : f32
    %142 = vector.broadcast %cst_33 : f32 to vector<1x8x4xf32>
    %cst_34 = arith.constant 0.000000e+00 : f32
    %143 = vector.broadcast %cst_34 : f32 to vector<8x1x4xf32>
    %144 = vector.extract_strided_slice %112 {offsets = [0, 0, 0], sizes = [8, 7, 4], strides = [1, 1, 1]} : vector<8x8x4xf32> to vector<8x7x4xf32>
    %145 = tpu.concatenate %143, %144 in 1 : vector<8x1x4xf32>, vector<8x7x4xf32> -> vector<8x8x4xf32>
    %146 = vector.extract_strided_slice %138 {offsets = [0, 0, 0], sizes = [8, 7, 4], strides = [1, 1, 1]} : vector<8x8x4xf32> to vector<8x7x4xf32>
    %147 = tpu.concatenate %143, %146 in 1 : vector<8x1x4xf32>, vector<8x7x4xf32> -> vector<8x8x4xf32>
    %148 = vector.extract_strided_slice %125 {offsets = [0, 0, 0], sizes = [7, 8, 4], strides = [1, 1, 1]} : vector<8x8x4xf32> to vector<7x8x4xf32>
    %149 = tpu.concatenate %142, %148 in 0 : vector<1x8x4xf32>, vector<7x8x4xf32> -> vector<8x8x4xf32>
    %150 = vector.extract_strided_slice %138 {offsets = [0, 0, 0], sizes = [7, 8, 4], strides = [1, 1, 1]} : vector<8x8x4xf32> to vector<7x8x4xf32>
    %151 = tpu.concatenate %142, %150 in 0 : vector<1x8x4xf32>, vector<7x8x4xf32> -> vector<8x8x4xf32>
    %152 = vector.extract_strided_slice %151 {offsets = [0, 0, 0], sizes = [8, 7, 4], strides = [1, 1, 1]} : vector<8x8x4xf32> to vector<8x7x4xf32>
    %153 = tpu.concatenate %143, %152 in 1 : vector<8x1x4xf32>, vector<8x7x4xf32> -> vector<8x8x4xf32>
    %154 = vector.extract_strided_slice %139 {offsets = [1, 1, 0], sizes = [1, 1, 4], strides = [1, 1, 1]} : vector<3x3x4xf32> to vector<1x1x4xf32>
    %155 = vector.shape_cast %154 : vector<1x1x4xf32> to vector<4xf32>
    %156 = vector.shape_cast %155 : vector<4xf32> to vector<1x1x4xf32>
    %157 = vector.broadcast %156 : vector<1x1x4xf32> to vector<8x8x4xf32>
    %158 = arith.mulf %99, %157 : vector<8x8x4xf32>
    %159 = vector.extract_strided_slice %139 {offsets = [1, 0, 0], sizes = [1, 1, 4], strides = [1, 1, 1]} : vector<3x3x4xf32> to vector<1x1x4xf32>
    %160 = vector.shape_cast %159 : vector<1x1x4xf32> to vector<4xf32>
    %161 = vector.shape_cast %160 : vector<4xf32> to vector<1x1x4xf32>
    %162 = vector.broadcast %161 : vector<1x1x4xf32> to vector<8x8x4xf32>
    %163 = arith.mulf %145, %162 : vector<8x8x4xf32>
    %164 = arith.addf %158, %163 : vector<8x8x4xf32>
    %165 = vector.extract_strided_slice %139 {offsets = [1, 2, 0], sizes = [1, 1, 4], strides = [1, 1, 1]} : vector<3x3x4xf32> to vector<1x1x4xf32>
    %166 = vector.shape_cast %165 : vector<1x1x4xf32> to vector<4xf32>
    %167 = vector.shape_cast %166 : vector<4xf32> to vector<1x1x4xf32>
    %168 = vector.broadcast %167 : vector<1x1x4xf32> to vector<8x8x4xf32>
    %169 = arith.mulf %112, %168 : vector<8x8x4xf32>
    %170 = arith.addf %164, %169 : vector<8x8x4xf32>
    %171 = vector.extract_strided_slice %139 {offsets = [0, 1, 0], sizes = [1, 1, 4], strides = [1, 1, 1]} : vector<3x3x4xf32> to vector<1x1x4xf32>
    %172 = vector.shape_cast %171 : vector<1x1x4xf32> to vector<4xf32>
    %173 = vector.shape_cast %172 : vector<4xf32> to vector<1x1x4xf32>
    %174 = vector.broadcast %173 : vector<1x1x4xf32> to vector<8x8x4xf32>
    %175 = arith.mulf %149, %174 : vector<8x8x4xf32>
    %176 = arith.addf %170, %175 : vector<8x8x4xf32>
    %177 = vector.extract_strided_slice %139 {offsets = [2, 1, 0], sizes = [1, 1, 4], strides = [1, 1, 1]} : vector<3x3x4xf32> to vector<1x1x4xf32>
    %178 = vector.shape_cast %177 : vector<1x1x4xf32> to vector<4xf32>
    %179 = vector.shape_cast %178 : vector<4xf32> to vector<1x1x4xf32>
    %180 = vector.broadcast %179 : vector<1x1x4xf32> to vector<8x8x4xf32>
    %181 = arith.mulf %125, %180 : vector<8x8x4xf32>
    %182 = arith.addf %176, %181 : vector<8x8x4xf32>
    %183 = vector.extract_strided_slice %139 {offsets = [0, 0, 0], sizes = [1, 1, 4], strides = [1, 1, 1]} : vector<3x3x4xf32> to vector<1x1x4xf32>
    %184 = vector.shape_cast %183 : vector<1x1x4xf32> to vector<4xf32>
    %185 = vector.shape_cast %184 : vector<4xf32> to vector<1x1x4xf32>
    %186 = vector.broadcast %185 : vector<1x1x4xf32> to vector<8x8x4xf32>
    %187 = arith.mulf %153, %186 : vector<8x8x4xf32>
    %188 = arith.addf %182, %187 : vector<8x8x4xf32>
    %189 = vector.extract_strided_slice %139 {offsets = [0, 2, 0], sizes = [1, 1, 4], strides = [1, 1, 1]} : vector<3x3x4xf32> to vector<1x1x4xf32>
    %190 = vector.shape_cast %189 : vector<1x1x4xf32> to vector<4xf32>
    %191 = vector.shape_cast %190 : vector<4xf32> to vector<1x1x4xf32>
    %192 = vector.broadcast %191 : vector<1x1x4xf32> to vector<8x8x4xf32>
    %193 = arith.mulf %151, %192 : vector<8x8x4xf32>
    %194 = arith.addf %188, %193 : vector<8x8x4xf32>
    %195 = vector.extract_strided_slice %139 {offsets = [2, 0, 0], sizes = [1, 1, 4], strides = [1, 1, 1]} : vector<3x3x4xf32> to vector<1x1x4xf32>
    %196 = vector.shape_cast %195 : vector<1x1x4xf32> to vector<4xf32>
    %197 = vector.shape_cast %196 : vector<4xf32> to vector<1x1x4xf32>
    %198 = vector.broadcast %197 : vector<1x1x4xf32> to vector<8x8x4xf32>
    %199 = arith.mulf %147, %198 : vector<8x8x4xf32>
    %200 = arith.addf %194, %199 : vector<8x8x4xf32>
    %201 = vector.extract_strided_slice %139 {offsets = [2, 2, 0], sizes = [1, 1, 4], strides = [1, 1, 1]} : vector<3x3x4xf32> to vector<1x1x4xf32>
    %202 = vector.shape_cast %201 : vector<1x1x4xf32> to vector<4xf32>
    %203 = vector.shape_cast %202 : vector<4xf32> to vector<1x1x4xf32>
    %204 = vector.broadcast %203 : vector<1x1x4xf32> to vector<8x8x4xf32>
    %205 = arith.mulf %138, %204 : vector<8x8x4xf32>
    %206 = arith.addf %200, %205 : vector<8x8x4xf32>
    %207 = vector.shape_cast %140 : vector<1x4xf32> to vector<1x1x4xf32>
    %208 = vector.broadcast %207 : vector<1x1x4xf32> to vector<8x8x4xf32>
    %209 = arith.mulf %206, %208 : vector<8x8x4xf32>
    %210 = vector.shape_cast %141 : vector<1x4xf32> to vector<1x1x4xf32>
    %211 = vector.broadcast %210 : vector<1x1x4xf32> to vector<8x8x4xf32>
    %212 = arith.addf %209, %211 : vector<8x8x4xf32>
    %213 = vector.shape_cast %83 : vector<8x8x4xf32> to vector<64x4xf32>
    %c0_35 = arith.constant 0 : index
    %c0_36 = arith.constant 0 : index
    %214 = vector.load %arg11[%c0_35, %c0_36] : memref<4x8xf32, #tpu.memory_space<vmem>>, vector<4x8xf32>
    %cst_37 = arith.constant dense<0.000000e+00> : vector<64x8xf32>
    %215 = tpu.matmul %213, %214, %cst_37 {dimension_numbers = #tpu.dot_dimension_numbers<[1], [0], [0], [1], [0, 0, 1, 1], [], []>} : vector<64x4xf32>, vector<4x8xf32>, vector<64x8xf32> -> vector<64x8xf32>
    %216 = vector.shape_cast %212 : vector<8x8x4xf32> to vector<64x4xf32>
    %c0_38 = arith.constant 0 : index
    %c0_39 = arith.constant 0 : index
    %217 = vector.load %arg12[%c0_38, %c0_39] : memref<4x8xf32, #tpu.memory_space<vmem>>, vector<4x8xf32>
    %cst_40 = arith.constant dense<0.000000e+00> : vector<64x8xf32>
    %218 = tpu.matmul %216, %217, %cst_40 {dimension_numbers = #tpu.dot_dimension_numbers<[1], [0], [0], [1], [0, 0, 1, 1], [], []>} : vector<64x4xf32>, vector<4x8xf32>, vector<64x8xf32> -> vector<64x8xf32>
    %219 = arith.addf %215, %218 : vector<64x8xf32>
    %c0_41 = arith.constant 0 : index
    %c0_42 = arith.constant 0 : index
    %220 = vector.load %arg13[%c0_41, %c0_42] : memref<1x8xf32, #tpu.memory_space<vmem>>, vector<1x8xf32>
    %221 = vector.broadcast %220 : vector<1x8xf32> to vector<64x8xf32>
    %222 = arith.mulf %219, %221 : vector<64x8xf32>
    %c0_43 = arith.constant 0 : index
    %c0_44 = arith.constant 0 : index
    %223 = vector.load %arg14[%c0_43, %c0_44] : memref<1x8xf32, #tpu.memory_space<vmem>>, vector<1x8xf32>
    %224 = vector.broadcast %223 : vector<1x8xf32> to vector<64x8xf32>
    %225 = arith.addf %222, %224 : vector<64x8xf32>
    %226 = arith.negf %225 : vector<64x8xf32>
    %227 = math.exp %226 : vector<64x8xf32>
    %cst_45 = arith.constant 1.000000e+00 : f32
    %228 = vector.broadcast %cst_45 : f32 to vector<64x8xf32>
    %229 = arith.addf %228, %227 : vector<64x8xf32>
    %230 = arith.divf %228, %229 : vector<64x8xf32>
    %231 = arith.mulf %225, %230 : vector<64x8xf32>
    %232 = vector.shape_cast %231 : vector<64x8xf32> to vector<8x8x8xf32>
    %c0_46 = arith.constant 0 : index
    %c0_47 = arith.constant 0 : index
    %c0_48 = arith.constant 0 : index
    %c0_49 = arith.constant 0 : index
    %233 = vector.load %arg15[%c0_46, %c0_47, %c0_48, %c0_49] : memref<1x8x8x8xf32, #tpu.memory_space<vmem>>, vector<1x8x8x8xf32>
    %234 = vector.shape_cast %233 : vector<1x8x8x8xf32> to vector<8x8x8xf32>
    %235 = vector.shape_cast %232 : vector<8x8x8xf32> to vector<1x8x8x8xf32>
    tpu.vector_store %arg15[%c0_46, %c0_47, %c0_48, %c0_49], %235 {strides = array<i32>} : memref<1x8x8x8xf32, #tpu.memory_space<vmem>>, vector<1x8x8x8xf32>,
    return
  }
  func.func @transform_0(%arg0: i32) -> (i32, i32, i32, i32, i32) {
    %c0_i32 = arith.constant 0 : i32
    %c0_i32_0 = arith.constant 0 : i32
    %c0_i32_1 = arith.constant 0 : i32
    %c0_i32_2 = arith.constant 0 : i32
    %c0_i32_3 = arith.constant 0 : i32
    return %arg0, %c0_i32, %c0_i32_0, %c0_i32_1, %c0_i32_2 : i32, i32, i32, i32, i32
  }
  func.func @transform_1(%arg0: i32) -> (i32, i32, i32) {
    %c0_i32 = arith.constant 0 : i32
    %c0_i32_0 = arith.constant 0 : i32
    %c0_i32_1 = arith.constant 0 : i32
    %c0_i32_2 = arith.constant 0 : i32
    return %c0_i32, %c0_i32_0, %c0_i32_1 : i32, i32, i32
  }
  func.func @transform_2(%arg0: i32) -> (i32, i32) {
    %c0_i32 = arith.constant 0 : i32
    %c0_i32_0 = arith.constant 0 : i32
    %c0_i32_1 = arith.constant 0 : i32
    return %c0_i32, %c0_i32_0 : i32, i32
  }
  func.func @transform_3(%arg0: i32) -> (i32, i32) {
    %c0_i32 = arith.constant 0 : i32
    %c0_i32_0 = arith.constant 0 : i32
    %c0_i32_1 = arith.constant 0 : i32
    return %c0_i32, %c0_i32_0 : i32, i32
  }
  func.func @transform_4(%arg0: i32) -> (i32, i32) {
    %c0_i32 = arith.constant 0 : i32
    %c0_i32_0 = arith.constant 0 : i32
    %c0_i32_1 = arith.constant 0 : i32
    return %c0_i32, %c0_i32_0 : i32, i32
  }
  func.func @transform_5(%arg0: i32) -> (i32, i32) {
    %c0_i32 = arith.constant 0 : i32
    %c0_i32_0 = arith.constant 0 : i32
    %c0_i32_1 = arith.constant 0 : i32
    return %c0_i32, %c0_i32_0 : i32, i32
  }
  func.func @transform_6(%arg0: i32) -> (i32, i32) {
    %c0_i32 = arith.constant 0 : i32
    %c0_i32_0 = arith.constant 0 : i32
    %c0_i32_1 = arith.constant 0 : i32
    return %c0_i32, %c0_i32_0 : i32, i32
  }
  func.func @transform_7(%arg0: i32) -> (i32, i32, i32) {
    %c0_i32 = arith.constant 0 : i32
    %c0_i32_0 = arith.constant 0 : i32
    %c0_i32_1 = arith.constant 0 : i32
    %c0_i32_2 = arith.constant 0 : i32
    return %c0_i32, %c0_i32_0, %c0_i32_1 : i32, i32, i32
  }
  func.func @transform_8(%arg0: i32) -> (i32, i32) {
    %c0_i32 = arith.constant 0 : i32
    %c0_i32_0 = arith.constant 0 : i32
    %c0_i32_1 = arith.constant 0 : i32
    return %c0_i32, %c0_i32_0 : i32, i32
  }
  func.func @transform_9(%arg0: i32) -> (i32, i32) {
    %c0_i32 = arith.constant 0 : i32
    %c0_i32_0 = arith.constant 0 : i32
    %c0_i32_1 = arith.constant 0 : i32
    return %c0_i32, %c0_i32_0 : i32, i32
  }
  func.func @transform_10(%arg0: i32) -> (i32, i32) {
    %c0_i32 = arith.constant 0 : i32
    %c0_i32_0 = arith.constant 0 : i32
    %c0_i32_1 = arith.constant 0 : i32
    return %c0_i32, %c0_i32_0 : i32, i32
  }
  func.func @transform_11(%arg0: i32) -> (i32, i32) {
    %c0_i32 = arith.constant 0 : i32
    %c0_i32_0 = arith.constant 0 : i32
    %c0_i32_1 = arith.constant 0 : i32
    return %c0_i32, %c0_i32_0 : i32, i32
  }
  func.func @transform_12(%arg0: i32) -> (i32, i32) {
    %c0_i32 = arith.constant 0 : i32
    %c0_i32_0 = arith.constant 0 : i32
    %c0_i32_1 = arith.constant 0 : i32
    return %c0_i32, %c0_i32_0 : i32, i32
  }
  func.func @transform_13(%arg0: i32) -> (i32, i32) {
    %c0_i32 = arith.constant 0 : i32
    %c0_i32_0 = arith.constant 0 : i32
    %c0_i32_1 = arith.constant 0 : i32
    return %c0_i32, %c0_i32_0 : i32, i32
  }
  func.func @transform_14(%arg0: i32) -> (i32, i32, i32, i32) {
    %c0_i32 = arith.constant 0 : i32
    %c0_i32_0 = arith.constant 0 : i32
    %c0_i32_1 = arith.constant 0 : i32
    %c0_i32_2 = arith.constant 0 : i32
    return %arg0, %c0_i32, %c0_i32_0, %c0_i32_1 : i32, i32, i32, i32
  }
}

</mosaic_0001>

<llo_original>
// kernel: residual_downsample.1
$region0: #{residual_downsample.1}
  #allocation0 [shape = 'u32[]', space=smem, size = 0x4, offset = 0x4, fixed_abs, tag = 'smem constant byte address 0x4 - core index']
  #allocation1 [shape = 'u32[72,128]{1,0:T(1,128)}', space=vmem, size = 0x9000, scoped, tag = 'internal scratch']
  %s0 = inlined_call_operand.vmem [shape: f32[2,8,2,8,8], index: 0, kind: input, shape index: {}]
  %s1 = inlined_call_operand.vmem [shape: f32[3,3,4], index: 1, kind: input, shape index: {}]
  %s2 = inlined_call_operand.vmem [shape: f32[1,4], index: 2, kind: input, shape index: {}]
  %s3 = inlined_call_operand.vmem [shape: f32[1,4], index: 3, kind: input, shape index: {}]
  %s4 = inlined_call_operand.vmem [shape: f32[4,4], index: 4, kind: input, shape index: {}]
  %s5 = inlined_call_operand.vmem [shape: f32[1,4], index: 5, kind: input, shape index: {}]
  %s6 = inlined_call_operand.vmem [shape: f32[1,4], index: 6, kind: input, shape index: {}]
  %s7 = inlined_call_operand.vmem [shape: f32[3,3,4], index: 7, kind: input, shape index: {}]
  %s8 = inlined_call_operand.vmem [shape: f32[1,4], index: 8, kind: input, shape index: {}]
  %s9 = inlined_call_operand.vmem [shape: f32[1,4], index: 9, kind: input, shape index: {}]
  %s10 = inlined_call_operand.vmem [shape: f32[4,8], index: 10, kind: input, shape index: {}]
  %s11 = inlined_call_operand.vmem [shape: f32[4,8], index: 11, kind: input, shape index: {}]
  %s12 = inlined_call_operand.vmem [shape: f32[1,8], index: 12, kind: input, shape index: {}]
  %s13 = inlined_call_operand.vmem [shape: f32[1,8], index: 13, kind: input, shape index: {}]
  %s14 = inlined_call_operand.vmem [shape: f32[2,8,8,8], index: 14, kind: output, shape index: {}]
  %s15 = sld [smem:[#allocation0]]
  $region89: #{residual_downsample.1} parent=0
    _
  %s17 = ssub.s32 1, %s15
  %s18 = scalar_select 0, %s17, %s15
  loop: start=0, step=1, limit=4
  $region2: #{residual_downsample.1} parent=0 // loop_pre_header
    _
  $region3: #{residual_downsample.1} parent=0 // loop_header
    %s20 = sphi 0, %s24
    %p21 = scmp.ge.s32.totalorder %s20, 4
    %s30 = sphi 0, %s32
    %s33 = sphi 0, %s30
    %s34 = sphi 0, %s33
    %s50 = sphi 0, %s34
    %s54 = sphi 0, %s54
    %s56 = sphi 0, %s54
    %s57 = sphi 0, %s56
    %s71 = sphi 0, %s57
    %s75 = sphi 0, %s75
    %s77 = sphi 0, %s75
    %s78 = sphi 0, %s77
    %s92 = sphi 0, %s78
    %s96 = sphi 0, %s96
    %s98 = sphi 0, %s96
    %s99 = sphi 0, %s98
    %s113 = sphi 0, %s99
    %s117 = sphi 0, %s117
    %s119 = sphi 0, %s117
    %s120 = sphi 0, %s119
    %s134 = sphi 0, %s120
    %s138 = sphi 0, %s138
    %s140 = sphi 0, %s138
    %s141 = sphi 0, %s140
    %s155 = sphi 0, %s141
    %s159 = sphi 0, %s159
    %s161 = sphi 0, %s159
    %s162 = sphi 0, %s161
    %s176 = sphi 0, %s162
    %s180 = sphi 0, %s180
    %s182 = sphi 0, %s180
    %s183 = sphi 0, %s182
    %s197 = sphi 0, %s183
    %s201 = sphi 0, %s201
    %s203 = sphi 0, %s201
    %s204 = sphi 0, %s203
    %s218 = sphi 0, %s204
    %s222 = sphi 0, %s222
    %s224 = sphi 0, %s222
    %s225 = sphi 0, %s224
    %s239 = sphi 0, %s225
    %s243 = sphi 0, %s243
    %s245 = sphi 0, %s243
    %s246 = sphi 0, %s245
    %s260 = sphi 0, %s246
    %s264 = sphi 0, %s264
    %s266 = sphi 0, %s264
    %s267 = sphi 0, %s266
    %s281 = sphi 0, %s267
    %s285 = sphi 0, %s285
    %s287 = sphi 0, %s285
    %s288 = sphi 0, %s287
    %s302 = sphi 0, %s288
    %s306 = sphi 0, %s306
    %s308 = sphi 0, %s306
    %s309 = sphi 0, %s308
    %s323 = sphi 0, %s309
    %s329 = sphi 0, %s331
    %s332 = sphi 0, %s329
    %s333 = sphi 0, %s332
    %s349 = sphi 0, %s333
  $region4: #{residual_downsample.1} parent=0 // loop_header_branch
    %23 = sbr.rel (%p21) target = $region8
  $region5: #{residual_downsample.1} parent=0 // loop_body
    %s25 = ssub.s32 %s20, 1
    %s26 = ssub.s32 %s20, 2
    %s27 = sadd.s32 %s20, 1
    %s28 = ssub.s32 %s20, %s27
    %p29 = scmp.eq.s32.totalorder %s28, 0
    %s31 = sadd.s32 %s30, 1
    %s32 = scalar_select %p29, %s30, %s31
    %p35 = pneg %p29
    %p36 = scmp.eq.s32.totalorder %s20, 1
    %p37 = por %p35, %p36
    %p38 = scmp.ne.s32.totalorder %s30, %s33
    %p39 = scmp.eq.s32.totalorder %s20, 0
    %p40 = por %p38, %p39
    %p41 = scmp.ne.s32.totalorder %s30, %s33
    %p42 = scmp.eq.s32.totalorder %s25, 1
    %p43 = por %p41, %p42
    %p44 = scmp.ne.s32.totalorder %s33, %s34
    %p45 = scmp.eq.s32.totalorder %s25, 0
    %p46 = por %p44, %p45
    %p47 = scmp.ne.s32.totalorder %s33, %s34
    %p48 = scmp.eq.s32.totalorder %s26, 1
    %p49 = por %p47, %p48
    %p51 = scmp.ne.s32.totalorder %s34, %s50
    %p52 = scmp.eq.s32.totalorder %s26, 0
    %p53 = por %p51, %p52
    %s55 = sadd.s32 %s54, 1
    %p58 = scmp.eq.s32.totalorder %s20, 1
    %p59 = scmp.ne.s32.totalorder %s54, %s56
    %p60 = scmp.eq.s32.totalorder %s20, 0
    %p61 = por %p59, %p60
    %p62 = scmp.ne.s32.totalorder %s54, %s56
    %p63 = scmp.eq.s32.totalorder %s25, 1
    %p64 = por %p62, %p63
    %p65 = scmp.ne.s32.totalorder %s56, %s57
    %p66 = scmp.eq.s32.totalorder %s25, 0
    %p67 = por %p65, %p66
    %p68 = scmp.ne.s32.totalorder %s56, %s57
    %p69 = scmp.eq.s32.totalorder %s26, 1
    %p70 = por %p68, %p69
    %p72 = scmp.ne.s32.totalorder %s57, %s71
    %p73 = scmp.eq.s32.totalorder %s26, 0
    %p74 = por %p72, %p73
    %s76 = sadd.s32 %s75, 1
    %p79 = scmp.eq.s32.totalorder %s20, 1
    %p80 = scmp.ne.s32.totalorder %s75, %s77
    %p81 = scmp.eq.s32.totalorder %s20, 0
    %p82 = por %p80, %p81
    %p83 = scmp.ne.s32.totalorder %s75, %s77
    %p84 = scmp.eq.s32.totalorder %s25, 1
    %p85 = por %p83, %p84
    %p86 = scmp.ne.s32.totalorder %s77, %s78
    %p87 = scmp.eq.s32.totalorder %s25, 0
    %p88 = por %p86, %p87
    %p89 = scmp.ne.s32.totalorder %s77, %s78
    %p90 = scmp.eq.s32.totalorder %s26, 1
    %p91 = por %p89, %p90
    %p93 = scmp.ne.s32.totalorder %s78, %s92
    %p94 = scmp.eq.s32.totalorder %s26, 0
    %p95 = por %p93, %p94
    %s97 = sadd.s32 %s96, 1
    %p100 = scmp.eq.s32.totalorder %s20, 1
    %p101 = scmp.ne.s32.totalorder %s96, %s98
    %p102 = scmp.eq.s32.totalorder %s20, 0
    %p103 = por %p101, %p102
    %p104 = scmp.ne.s32.totalorder %s96, %s98
    %p105 = scmp.eq.s32.totalorder %s25, 1
    %p106 = por %p104, %p105
    %p107 = scmp.ne.s32.totalorder %s98, %s99
    %p108 = scmp.eq.s32.totalorder %s25, 0
    %p109 = por %p107, %p108
    %p110 = scmp.ne.s32.totalorder %s98, %s99
    %p111 = scmp.eq.s32.totalorder %s26, 1
    %p112 = por %p110, %p111
    %p114 = scmp.ne.s32.totalorder %s99, %s113
    %p115 = scmp.eq.s32.totalorder %s26, 0
    %p116 = por %p114, %p115
    %s118 = sadd.s32 %s117, 1
    %p121 = scmp.eq.s32.totalorder %s20, 1
    %p122 = scmp.ne.s32.totalorder %s117, %s119
    %p123 = scmp.eq.s32.totalorder %s20, 0
    %p124 = por %p122, %p123
    %p125 = scmp.ne.s32.totalorder %s117, %s119
    %p126 = scmp.eq.s32.totalorder %s25, 1
    %p127 = por %p125, %p126
    %p128 = scmp.ne.s32.totalorder %s119, %s120
    %p129 = scmp.eq.s32.totalorder %s25, 0
    %p130 = por %p128, %p129
    %p131 = scmp.ne.s32.totalorder %s119, %s120
    %p132 = scmp.eq.s32.totalorder %s26, 1
    %p133 = por %p131, %p132
    %p135 = scmp.ne.s32.totalorder %s120, %s134
    %p136 = scmp.eq.s32.totalorder %s26, 0
    %p137 = por %p135, %p136
    %s139 = sadd.s32 %s138, 1
    %p142 = scmp.eq.s32.totalorder %s20, 1
    %p143 = scmp.ne.s32.totalorder %s138, %s140
    %p144 = scmp.eq.s32.totalorder %s20, 0
    %p145 = por %p143, %p144
    %p146 = scmp.ne.s32.totalorder %s138, %s140
    %p147 = scmp.eq.s32.totalorder %s25, 1
    %p148 = por %p146, %p147
    %p149 = scmp.ne.s32.totalorder %s140, %s141
    %p150 = scmp.eq.s32.totalorder %s25, 0
    %p151 = por %p149, %p150
    %p152 = scmp.ne.s32.totalorder %s140, %s141
    %p153 = scmp.eq.s32.totalorder %s26, 1
    %p154 = por %p152, %p153
    %p156 = scmp.ne.s32.totalorder %s141, %s155
    %p157 = scmp.eq.s32.totalorder %s26, 0
    %p158 = por %p156, %p157
    %s160 = sadd.s32 %s159, 1
    %p163 = scmp.eq.s32.totalorder %s20, 1
    %p164 = scmp.ne.s32.totalorder %s159, %s161
    %p165 = scmp.eq.s32.totalorder %s20, 0
    %p166 = por %p164, %p165
    %p167 = scmp.ne.s32.totalorder %s159, %s161
    %p168 = scmp.eq.s32.totalorder %s25, 1
    %p169 = por %p167, %p168
    %p170 = scmp.ne.s32.totalorder %s161, %s162
    %p171 = scmp.eq.s32.totalorder %s25, 0
    %p172 = por %p170, %p171
    %p173 = scmp.ne.s32.totalorder %s161, %s162
    %p174 = scmp.eq.s32.totalorder %s26, 1
    %p175 = por %p173, %p174
    %p177 = scmp.ne.s32.totalorder %s162, %s176
    %p178 = scmp.eq.s32.totalorder %s26, 0
    %p179 = por %p177, %p178
    %s181 = sadd.s32 %s180, 1
    %p184 = scmp.eq.s32.totalorder %s20, 1
    %p185 = scmp.ne.s32.totalorder %s180, %s182
    %p186 = scmp.eq.s32.totalorder %s20, 0
    %p187 = por %p185, %p186
    %p188 = scmp.ne.s32.totalorder %s180, %s182
    %p189 = scmp.eq.s32.totalorder %s25, 1
    %p190 = por %p188, %p189
    %p191 = scmp.ne.s32.totalorder %s182, %s183
    %p192 = scmp.eq.s32.totalorder %s25, 0
    %p193 = por %p191, %p192
    %p194 = scmp.ne.s32.totalorder %s182, %s183
    %p195 = scmp.eq.s32.totalorder %s26, 1
    %p196 = por %p194, %p195
    %p198 = scmp.ne.s32.totalorder %s183, %s197
    %p199 = scmp.eq.s32.totalorder %s26, 0
    %p200 = por %p198, %p199
    %s202 = sadd.s32 %s201, 1
    %p205 = scmp.eq.s32.totalorder %s20, 1
    %p206 = scmp.ne.s32.totalorder %s201, %s203
    %p207 = scmp.eq.s32.totalorder %s20, 0
    %p208 = por %p206, %p207
    %p209 = scmp.ne.s32.totalorder %s201, %s203
    %p210 = scmp.eq.s32.totalorder %s25, 1
    %p211 = por %p209, %p210
    %p212 = scmp.ne.s32.totalorder %s203, %s204
    %p213 = scmp.eq.s32.totalorder %s25, 0
    %p214 = por %p212, %p213
    %p215 = scmp.ne.s32.totalorder %s203, %s204
    %p216 = scmp.eq.s32.totalorder %s26, 1
    %p217 = por %p215, %p216
    %p219 = scmp.ne.s32.totalorder %s204, %s218
    %p220 = scmp.eq.s32.totalorder %s26, 0
    %p221 = por %p219, %p220
    %s223 = sadd.s32 %s222, 1
    %p226 = scmp.eq.s32.totalorder %s20, 1
    %p227 = scmp.ne.s32.totalorder %s222, %s224
    %p228 = scmp.eq.s32.totalorder %s20, 0
    %p229 = por %p227, %p228
    %p230 = scmp.ne.s32.totalorder %s222, %s224
    %p231 = scmp.eq.s32.totalorder %s25, 1
    %p232 = por %p230, %p231
    %p233 = scmp.ne.s32.totalorder %s224, %s225
    %p234 = scmp.eq.s32.totalorder %s25, 0
    %p235 = por %p233, %p234
    %p236 = scmp.ne.s32.totalorder %s224, %s225
    %p237 = scmp.eq.s32.totalorder %s26, 1
    %p238 = por %p236, %p237
    %p240 = scmp.ne.s32.totalorder %s225, %s239
    %p241 = scmp.eq.s32.totalorder %s26, 0
    %p242 = por %p240, %p241
    %s244 = sadd.s32 %s243, 1
    %p247 = scmp.eq.s32.totalorder %s20, 1
    %p248 = scmp.ne.s32.totalorder %s243, %s245
    %p249 = scmp.eq.s32.totalorder %s20, 0
    %p250 = por %p248, %p249
    %p251 = scmp.ne.s32.totalorder %s243, %s245
    %p252 = scmp.eq.s32.totalorder %s25, 1
    %p253 = por %p251, %p252
    %p254 = scmp.ne.s32.totalorder %s245, %s246
    %p255 = scmp.eq.s32.totalorder %s25, 0
    %p256 = por %p254, %p255
    %p257 = scmp.ne.s32.totalorder %s245, %s246
    %p258 = scmp.eq.s32.totalorder %s26, 1
    %p259 = por %p257, %p258
    %p261 = scmp.ne.s32.totalorder %s246, %s260
    %p262 = scmp.eq.s32.totalorder %s26, 0
    %p263 = por %p261, %p262
    %s265 = sadd.s32 %s264, 1
    %p268 = scmp.eq.s32.totalorder %s20, 1
    %p269 = scmp.ne.s32.totalorder %s264, %s266
    %p270 = scmp.eq.s32.totalorder %s20, 0
    %p271 = por %p269, %p270
    %p272 = scmp.ne.s32.totalorder %s264, %s266
    %p273 = scmp.eq.s32.totalorder %s25, 1
    %p274 = por %p272, %p273
    %p275 = scmp.ne.s32.totalorder %s266, %s267
    %p276 = scmp.eq.s32.totalorder %s25, 0
    %p277 = por %p275, %p276
    %p278 = scmp.ne.s32.totalorder %s266, %s267
    %p279 = scmp.eq.s32.totalorder %s26, 1
    %p280 = por %p278, %p279
    %p282 = scmp.ne.s32.totalorder %s267, %s281
    %p283 = scmp.eq.s32.totalorder %s26, 0
    %p284 = por %p282, %p283
    %s286 = sadd.s32 %s285, 1
    %p289 = scmp.eq.s32.totalorder %s20, 1
    %p290 = scmp.ne.s32.totalorder %s285, %s287
    %p291 = scmp.eq.s32.totalorder %s20, 0
    %p292 = por %p290, %p291
    %p293 = scmp.ne.s32.totalorder %s285, %s287
    %p294 = scmp.eq.s32.totalorder %s25, 1
    %p295 = por %p293, %p294
    %p296 = scmp.ne.s32.totalorder %s287, %s288
    %p297 = scmp.eq.s32.totalorder %s25, 0
    %p298 = por %p296, %p297
    %p299 = scmp.ne.s32.totalorder %s287, %s288
    %p300 = scmp.eq.s32.totalorder %s26, 1
    %p301 = por %p299, %p300
    %p303 = scmp.ne.s32.totalorder %s288, %s302
    %p304 = scmp.eq.s32.totalorder %s26, 0
    %p305 = por %p303, %p304
    %s307 = sadd.s32 %s306, 1
    %p310 = scmp.eq.s32.totalorder %s20, 1
    %p311 = scmp.ne.s32.totalorder %s306, %s308
    %p312 = scmp.eq.s32.totalorder %s20, 0
    %p313 = por %p311, %p312
    %p314 = scmp.ne.s32.totalorder %s306, %s308
    %p315 = scmp.eq.s32.totalorder %s25, 1
    %p316 = por %p314, %p315
    %p317 = scmp.ne.s32.totalorder %s308, %s309
    %p318 = scmp.eq.s32.totalorder %s25, 0
    %p319 = por %p317, %p318
    %p320 = scmp.ne.s32.totalorder %s308, %s309
    %p321 = scmp.eq.s32.totalorder %s26, 1
    %p322 = por %p320, %p321
    %p324 = scmp.ne.s32.totalorder %s309, %s323
    %p325 = scmp.eq.s32.totalorder %s26, 0
    %p326 = por %p324, %p325
    %s327 = ssub.s32 %s20, %s27
    %p328 = scmp.eq.s32.totalorder %s327, 0
    %s330 = sadd.s32 %s329, 1
    %s331 = scalar_select %p328, %s329, %s330
    %p334 = pneg %p328
    %p335 = scmp.eq.s32.totalorder %s20, 1
    %p336 = por %p334, %p335
    %p337 = scmp.ne.s32.totalorder %s329, %s332
    %p338 = scmp.eq.s32.totalorder %s20, 0
    %p339 = por %p337, %p338
    %p340 = scmp.ne.s32.totalorder %s329, %s332
    %p341 = scmp.eq.s32.totalorder %s25, 1
    %p342 = por %p340, %p341
    %p343 = scmp.ne.s32.totalorder %s332, %s333
    %p344 = scmp.eq.s32.totalorder %s25, 0
    %p345 = por %p343, %p344
    %p346 = scmp.ne.s32.totalorder %s332, %s333
    %p347 = scmp.eq.s32.totalorder %s26, 1
    %p348 = por %p346, %p347
    %p350 = scmp.ne.s32.totalorder %s333, %s349
    %p351 = scmp.eq.s32.totalorder %s26, 0
    %p352 = por %p350, %p351
    %p353 = scmp.le.s32.totalorder 1, %s20
    %p354 = scmp.lt.s32.totalorder %s20, 3
    %p355 = pnand %p353, %p354
    %p356 = pneg %p355
    // Predicated region
    $region9: #{residual_downsample.1} parent=5 // pred_check
      _
    $region10: #{residual_downsample.1} parent=5 // pred_check_branch
      %358 = sbr.rel (%p355) target = $region12
    $region11: #{residual_downsample.1} parent=5 // pred_region
      %s359 = ssub.s32 %s20, 1
      // Predicated region
      $region13: #{residual_downsample.1} parent=11 // pred_check
        %p360 = pneg %p67
      $region14: #{residual_downsample.1} parent=11 // pred_check_branch
        %362 = sbr.rel (%p360) target = $region16
      $region15: #{residual_downsample.1} parent=11 // pred_region
        _
      $region16: #{residual_downsample.1} parent=11 // pred_fallthru
        _
      // Predicated region
      $region17: #{residual_downsample.1} parent=11 // pred_check
        %p363 = pneg %p88
      $region18: #{residual_downsample.1} parent=11 // pred_check_branch
        %365 = sbr.rel (%p363) target = $region20
      $region19: #{residual_downsample.1} parent=11 // pred_region
        _
      $region20: #{residual_downsample.1} parent=11 // pred_fallthru
        _
      // Predicated region
      $region21: #{residual_downsample.1} parent=11 // pred_check
        %p366 = pneg %p109
      $region22: #{residual_downsample.1} parent=11 // pred_check_branch
        %368 = sbr.rel (%p366) target = $region24
      $region23: #{residual_downsample.1} parent=11 // pred_region
        _
      $region24: #{residual_downsample.1} parent=11 // pred_fallthru
        _
      // Predicated region
      $region25: #{residual_downsample.1} parent=11 // pred_check
        %p369 = pneg %p130
      $region26: #{residual_downsample.1} parent=11 // pred_check_branch
        %371 = sbr.rel (%p369) target = $region28
      $region27: #{residual_downsample.1} parent=11 // pred_region
        _
      $region28: #{residual_downsample.1} parent=11 // pred_fallthru
        _
      // Predicated region
      $region29: #{residual_downsample.1} parent=11 // pred_check
        %p372 = pneg %p151
      $region30: #{residual_downsample.1} parent=11 // pred_check_branch
        %374 = sbr.rel (%p372) target = $region32
      $region31: #{residual_downsample.1} parent=11 // pred_region
        _
      $region32: #{residual_downsample.1} parent=11 // pred_fallthru
        _
      // Predicated region
      $region33: #{residual_downsample.1} parent=11 // pred_check
        %p375 = pneg %p172
      $region34: #{residual_downsample.1} parent=11 // pred_check_branch
        %377 = sbr.rel (%p375) target = $region36
      $region35: #{residual_downsample.1} parent=11 // pred_region
        _
      $region36: #{residual_downsample.1} parent=11 // pred_fallthru
        _
      // Predicated region
      $region37: #{residual_downsample.1} parent=11 // pred_check
        %p378 = pneg %p193
      $region38: #{residual_downsample.1} parent=11 // pred_check_branch
        %380 = sbr.rel (%p378) target = $region40
      $region39: #{residual_downsample.1} parent=11 // pred_region
        _
      $region40: #{residual_downsample.1} parent=11 // pred_fallthru
        _
      // Predicated region
      $region41: #{residual_downsample.1} parent=11 // pred_check
        %p381 = pneg %p214
      $region42: #{residual_downsample.1} parent=11 // pred_check_branch
        %383 = sbr.rel (%p381) target = $region44
      $region43: #{residual_downsample.1} parent=11 // pred_region
        _
      $region44: #{residual_downsample.1} parent=11 // pred_fallthru
        _
      // Predicated region
      $region45: #{residual_downsample.1} parent=11 // pred_check
        %p384 = pneg %p235
      $region46: #{residual_downsample.1} parent=11 // pred_check_branch
        %386 = sbr.rel (%p384) target = $region48
      $region47: #{residual_downsample.1} parent=11 // pred_region
        _
      $region48: #{residual_downsample.1} parent=11 // pred_fallthru
        _
      // Predicated region
      $region49: #{residual_downsample.1} parent=11 // pred_check
        %p387 = pneg %p256
      $region50: #{residual_downsample.1} parent=11 // pred_check_branch
        %389 = sbr.rel (%p387) target = $region52
      $region51: #{residual_downsample.1} parent=11 // pred_region
        _
      $region52: #{residual_downsample.1} parent=11 // pred_fallthru
        _
      // Predicated region
      $region53: #{residual_downsample.1} parent=11 // pred_check
        %p390 = pneg %p277
      $region54: #{residual_downsample.1} parent=11 // pred_check_branch
        %392 = sbr.rel (%p390) target = $region56
      $region55: #{residual_downsample.1} parent=11 // pred_region
        _
      $region56: #{residual_downsample.1} parent=11 // pred_fallthru
        _
      // Predicated region
      $region57: #{residual_downsample.1} parent=11 // pred_check
        %p393 = pneg %p298
      $region58: #{residual_downsample.1} parent=11 // pred_check_branch
        %395 = sbr.rel (%p393) target = $region60
      $region59: #{residual_downsample.1} parent=11 // pred_region
        _
      $region60: #{residual_downsample.1} parent=11 // pred_fallthru
        _
      // Predicated region
      $region61: #{residual_downsample.1} parent=11 // pred_check
        %p396 = pneg %p319
      $region62: #{residual_downsample.1} parent=11 // pred_check_branch
        %398 = sbr.rel (%p396) target = $region64
      $region63: #{residual_downsample.1} parent=11 // pred_region
        _
      $region64: #{residual_downsample.1} parent=11 // pred_fallthru
        _
    $region12: #{residual_downsample.1} parent=5 // pred_fallthru
      _
    %p399 = scmp.lt.s32.totalorder %s20, 2
    // Predicated region
    $region65: #{residual_downsample.1} parent=5 // pred_check
      %p400 = pneg %p399
    $region66: #{residual_downsample.1} parent=5 // pred_check_branch
      %402 = sbr.rel (%p400) target = $region68
    $region67: #{residual_downsample.1} parent=5 // pred_region
      // Predicated region
      $region69: #{residual_downsample.1} parent=67 // pred_check
        %p403 = pneg %p40
      $region70: #{residual_downsample.1} parent=67 // pred_check_branch
        %405 = sbr.rel (%p403) target = $region72
      $region71: #{residual_downsample.1} parent=67 // pred_region
        %p406 = scmp.lt.s32.totalorder %s20, 1
        %s407 = scalar_select %p406, %s20, 1
        %s408 = smul.addr %s407, 16
        %s409 = smul.addr %s408, 8
        %s410 = scalar_lea.vmem %s0, %s409
      $region72: #{residual_downsample.1} parent=67 // pred_fallthru
        _
    $region68: #{residual_downsample.1} parent=5 // pred_fallthru
      _
    %p411 = scmp.le.s32.totalorder 1, %s20
    %p412 = scmp.lt.s32.totalorder %s20, 3
    %p413 = pnand %p411, %p412
    %p414 = pneg %p413
    // Predicated region
    $region73: #{residual_downsample.1} parent=5 // pred_check
      _
    $region74: #{residual_downsample.1} parent=5 // pred_check_branch
      %416 = sbr.rel (%p413) target = $region76
    $region75: #{residual_downsample.1} parent=5 // pred_region
      %s417 = ssub.s32 %s20, 1
      %p418 = scmp.lt.s32.totalorder %s25, 1
      %s419 = scalar_select %p418, %s25, 1
      %s420 = smul.addr %s419, 16
      %s421 = smul.addr %s420, 8
      %s422 = scalar_lea.vmem %s0, %s421
      %p423 = pneg %p46
      %p424 = pneg %p43
      %p425 = pneg %p67
      %p426 = pneg %p64
      %p427 = pneg %p88
      %p428 = pneg %p85
      %p429 = pneg %p109
      %p430 = pneg %p106
      %p431 = pneg %p130
      %p432 = pneg %p127
      %p433 = pneg %p151
      %p434 = pneg %p148
      %p435 = pneg %p172
      %p436 = pneg %p169
      %p437 = pneg %p193
      %p438 = pneg %p190
      %p439 = pneg %p214
      %p440 = pneg %p211
      %p441 = pneg %p235
      %p442 = pneg %p232
      %p443 = pneg %p256
      %p444 = pneg %p253
      %p445 = pneg %p277
      %p446 = pneg %p274
      %p447 = pneg %p298
      %p448 = pneg %p295
      %p449 = pneg %p319
      %p450 = pneg %p316
      %p451 = pneg %p345
      %p452 = pneg %p342
      %p453 = scmp.lt.s32.totalorder %s25, 1
      %s454 = scalar_select %p453, %s25, 1
      %s455 = smul.addr %s454, 8
      %s456 = smul.addr %s455, 8
      %s457 = scalar_lea.vmem %s14, %s456
      %p458 = scmp.lt.s32.totalorder %s25, 1
      %s459 = scalar_select %p458, %s25, 1
      %s460 = smul.addr %s459, 16
      %s461 = smul.addr %s460, 8
      %s462 = scalar_lea.vmem %s0, %s461
      %p463 = scmp.lt.s32.totalorder %s25, 1
      %s464 = scalar_select %p463, %s25, 1
      %s465 = smul.addr %s464, 8
      %s466 = smul.addr %s465, 8
      %s467 = scalar_lea.vmem %s14, %s466
      %v468 = vld [vmem:[%s462] sm:$0xff]
      %v469 = vld [vmem:[%s462 + $0x8] sm:$0xff]
      %v470 = vld [vmem:[%s462 + $0x10] sm:$0xff]
      %v471 = vld [vmem:[%s462 + $0x18] sm:$0xff]
      %v472 = vld [vmem:[%s462 + $0x20] sm:$0xff]
      %v473 = vld [vmem:[%s462 + $0x28] sm:$0xff]
      %v474 = vld [vmem:[%s462 + $0x30] sm:$0xff]
      %v475 = vld [vmem:[%s462 + $0x38] sm:$0xff]
      %v476 = vld [vmem:[%s462 + $0x40] sm:$0xff]
      %v477 = vld [vmem:[%s462 + $0x48] sm:$0xff]
      %v478 = vld [vmem:[%s462 + $0x50] sm:$0xff]
      %v479 = vld [vmem:[%s462 + $0x58] sm:$0xff]
      %v480 = vld [vmem:[%s462 + $0x60] sm:$0xff]
      %v481 = vld [vmem:[%s462 + $0x68] sm:$0xff]
      %v482 = vld [vmem:[%s462 + $0x70] sm:$0xff]
      %v483 = vld [vmem:[%s462 + $0x78] sm:$0xff]
      %v484 = vld [vmem:[%s1] sm:$0x7]
      %v485 = vld [vmem:[%s1 + $0x4] sm:$0x7]
      %v486 = vld [vmem:[%s1 + $0x8] sm:$0x7]
      %v487 = vld [vmem:[%s2] sm:$0x1]
      %v488 = vld [vmem:[%s3] sm:$0x1]
      %v497 = vrot.slane %v468, 7
      %v498 = vrot.slane %v470, 7
      %v499 = vrot.slane %v472, 7
      %v500 = vrot.slane %v474, 7
      %v501 = vrot.slane %v476, 7
      %v502 = vrot.slane %v478, 7
      %v503 = vrot.slane %v480, 7
      %v504 = vrot.slane %v482, 7
      %505 = vrot.lane.b32.xlu0 %v497, 124
      %v506 = vpop.permute.xlu0 %505
      %507 = vrot.lane.b32.xlu0 %v498, 124
      %v508 = vpop.permute.xlu0 %507
      %509 = vrot.lane.b32.xlu0 %v499, 124
      %v510 = vpop.permute.xlu0 %509
      %511 = vrot.lane.b32.xlu0 %v500, 124
      %v512 = vpop.permute.xlu0 %511
      %513 = vrot.lane.b32.xlu0 %v501, 124
      %v514 = vpop.permute.xlu0 %513
      %515 = vrot.lane.b32.xlu0 %v502, 124
      %v516 = vpop.permute.xlu0 %515
      %517 = vrot.lane.b32.xlu0 %v503, 124
      %v518 = vpop.permute.xlu0 %517
      %519 = vrot.lane.b32.xlu0 %v504, 124
      %v520 = vpop.permute.xlu0 %519
      %vm529 = vcmask 1040384
      %v530 = vsel %vm529, 0.0, %v506
      %v531 = vsel %vm529, 0.0, %v508
      %v532 = vsel %vm529, 0.0, %v510
      %v533 = vsel %vm529, 0.0, %v512
      %v534 = vsel %vm529, 0.0, %v514
      %v535 = vsel %vm529, 0.0, %v516
      %v536 = vsel %vm529, 0.0, %v518
      %v537 = vsel %vm529, 0.0, %v520
      %v546 = vrot.slane %v469, 7
      %v547 = vrot.slane %v471, 7
      %v548 = vrot.slane %v473, 7
      %v549 = vrot.slane %v475, 7
      %v550 = vrot.slane %v477, 7
      %v551 = vrot.slane %v479, 7
      %v552 = vrot.slane %v481, 7
      %v553 = vrot.slane %v483, 7
      %554 = vrot.lane.b32.xlu0 %v546, 124
      %v555 = vpop.permute.xlu0 %554
      %556 = vrot.lane.b32.xlu0 %v547, 124
      %v557 = vpop.permute.xlu0 %556
      %558 = vrot.lane.b32.xlu0 %v548, 124
      %v559 = vpop.permute.xlu0 %558
      %560 = vrot.lane.b32.xlu0 %v549, 124
      %v561 = vpop.permute.xlu0 %560
      %562 = vrot.lane.b32.xlu0 %v550, 124
      %v563 = vpop.permute.xlu0 %562
      %564 = vrot.lane.b32.xlu0 %v551, 124
      %v565 = vpop.permute.xlu0 %564
      %566 = vrot.lane.b32.xlu0 %v552, 124
      %v567 = vpop.permute.xlu0 %566
      %568 = vrot.lane.b32.xlu0 %v553, 124
      %v569 = vpop.permute.xlu0 %568
      %v578 = vsel %vm529, 0.0, %v555
      %v579 = vsel %vm529, 0.0, %v557
      %v580 = vsel %vm529, 0.0, %v559
      %v581 = vsel %vm529, 0.0, %v561
      %v582 = vsel %vm529, 0.0, %v563
      %v583 = vsel %vm529, 0.0, %v565
      %v584 = vsel %vm529, 0.0, %v567
      %v585 = vsel %vm529, 0.0, %v569
      %586 = vrot.lane.b32.xlu0 %v469, 124
      %v587 = vpop.permute.xlu0 %586
      %588 = vrot.lane.b32.xlu0 %v471, 124
      %v589 = vpop.permute.xlu0 %588
      %590 = vrot.lane.b32.xlu0 %v473, 124
      %v591 = vpop.permute.xlu0 %590
      %592 = vrot.lane.b32.xlu0 %v475, 124
      %v593 = vpop.permute.xlu0 %592
      %594 = vrot.lane.b32.xlu0 %v477, 124
      %v595 = vpop.permute.xlu0 %594
      %596 = vrot.lane.b32.xlu0 %v479, 124
      %v597 = vpop.permute.xlu0 %596
      %598 = vrot.lane.b32.xlu0 %v481, 124
      %v599 = vpop.permute.xlu0 %598
      %v608 = vrot.slane 0.0, 7
      %v609 = vrot.slane %v587, 7
      %v610 = vrot.slane %v589, 7
      %v611 = vrot.slane %v591, 7
      %v612 = vrot.slane %v593, 7
      %v613 = vrot.slane %v595, 7
      %v614 = vrot.slane %v597, 7
      %v615 = vrot.slane %v599, 7
      %v624 = vsel %vm529, 0.0, %v608
      %v625 = vsel %vm529, 0.0, %v609
      %v626 = vsel %vm529, 0.0, %v610
      %v627 = vsel %vm529, 0.0, %v611
      %v628 = vsel %vm529, 0.0, %v612
      %v629 = vsel %vm529, 0.0, %v613
      %v630 = vsel %vm529, 0.0, %v614
      %v631 = vsel %vm529, 0.0, %v615
      %v632 = vperm.slane %v485, 1
      %v633 = vmul.f32 %v468, %v632
      %v634 = vmul.f32 %v470, %v632
      %v635 = vmul.f32 %v472, %v632
      %v636 = vmul.f32 %v474, %v632
      %v637 = vmul.f32 %v476, %v632
      %v638 = vmul.f32 %v478, %v632
      %v639 = vmul.f32 %v480, %v632
      %v640 = vmul.f32 %v482, %v632
      %v641 = vperm.slane %v485, 0
      %v642 = vmul.f32 %v530, %v641
      %v643 = vmul.f32 %v531, %v641
      %v644 = vmul.f32 %v532, %v641
      %v645 = vmul.f32 %v533, %v641
      %v646 = vmul.f32 %v534, %v641
      %v647 = vmul.f32 %v535, %v641
      %v648 = vmul.f32 %v536, %v641
      %v649 = vmul.f32 %v537, %v641
      %v650 = vadd.f32 %v633, %v642
      %v651 = vadd.f32 %v634, %v643
      %v652 = vadd.f32 %v635, %v644
      %v653 = vadd.f32 %v636, %v645
      %v654 = vadd.f32 %v637, %v646
      %v655 = vadd.f32 %v638, %v647
      %v656 = vadd.f32 %v639, %v648
      %v657 = vadd.f32 %v640, %v649
      %v658 = vperm.slane %v485, 2
      %660 = vrot.lane.b32.xlu0 %v658, 4
      %v661 = vpop.permute.xlu0 %660
      %v663 = vmul.f32 %v468, %v661
      %v664 = vmul.f32 %v470, %v661
      %v665 = vmul.f32 %v472, %v661
      %v666 = vmul.f32 %v474, %v661
      %v667 = vmul.f32 %v476, %v661
      %v668 = vmul.f32 %v478, %v661
      %v669 = vmul.f32 %v480, %v661
      %v670 = vmul.f32 %v482, %v661
      %679 = vrot.lane.b32.xlu0 %v663, 124
      %v680 = vpop.permute.xlu0 %679
      %681 = vrot.lane.b32.xlu0 %v664, 124
      %v682 = vpop.permute.xlu0 %681
      %683 = vrot.lane.b32.xlu0 %v665, 124
      %v684 = vpop.permute.xlu0 %683
      %685 = vrot.lane.b32.xlu0 %v666, 124
      %v686 = vpop.permute.xlu0 %685
      %687 = vrot.lane.b32.xlu0 %v667, 124
      %v688 = vpop.permute.xlu0 %687
      %689 = vrot.lane.b32.xlu0 %v668, 124
      %v690 = vpop.permute.xlu0 %689
      %691 = vrot.lane.b32.xlu0 %v669, 124
      %v692 = vpop.permute.xlu0 %691
      %693 = vrot.lane.b32.xlu0 %v670, 124
      %v694 = vpop.permute.xlu0 %693
      %v703 = vadd.f32 %v650, %v680
      %v704 = vadd.f32 %v651, %v682
      %v705 = vadd.f32 %v652, %v684
      %v706 = vadd.f32 %v653, %v686
      %v707 = vadd.f32 %v654, %v688
      %v708 = vadd.f32 %v655, %v690
      %v709 = vadd.f32 %v656, %v692
      %v710 = vadd.f32 %v657, %v694
      %v711 = vperm.slane %v484, 1
      %v712 = vmul.f32 %v711, 0.0
      %v713 = vmul.f32 %v469, %v711
      %v714 = vmul.f32 %v471, %v711
      %v715 = vmul.f32 %v473, %v711
      %v716 = vmul.f32 %v475, %v711
      %v717 = vmul.f32 %v477, %v711
      %v718 = vmul.f32 %v479, %v711
      %v719 = vmul.f32 %v481, %v711
      %v720 = vadd.f32 %v703, %v712
      %v721 = vadd.f32 %v704, %v713
      %v722 = vadd.f32 %v705, %v714
      %v723 = vadd.f32 %v706, %v715
      %v724 = vadd.f32 %v707, %v716
      %v725 = vadd.f32 %v708, %v717
      %v726 = vadd.f32 %v709, %v718
      %v727 = vadd.f32 %v710, %v719
      %v728 = vperm.slane %v486, 1
      %v729 = vmul.f32 %v469, %v728
      %v730 = vmul.f32 %v471, %v728
      %v731 = vmul.f32 %v473, %v728
      %v732 = vmul.f32 %v475, %v728
      %v733 = vmul.f32 %v477, %v728
      %v734 = vmul.f32 %v479, %v728
      %v735 = vmul.f32 %v481, %v728
      %v736 = vmul.f32 %v483, %v728
      %v737 = vadd.f32 %v720, %v729
      %v738 = vadd.f32 %v721, %v730
      %v739 = vadd.f32 %v722, %v731
      %v740 = vadd.f32 %v723, %v732
      %v741 = vadd.f32 %v724, %v733
      %v742 = vadd.f32 %v725, %v734
      %v743 = vadd.f32 %v726, %v735
      %v744 = vadd.f32 %v727, %v736
      %v745 = vperm.slane %v484, 0
      %v746 = vmul.f32 %v624, %v745
      %v747 = vmul.f32 %v625, %v745
      %v748 = vmul.f32 %v626, %v745
      %v749 = vmul.f32 %v627, %v745
      %v750 = vmul.f32 %v628, %v745
      %v751 = vmul.f32 %v629, %v745
      %v752 = vmul.f32 %v630, %v745
      %v753 = vmul.f32 %v631, %v745
      %v754 = vadd.f32 %v737, %v746
      %v755 = vadd.f32 %v738, %v747
      %v756 = vadd.f32 %v739, %v748
      %v757 = vadd.f32 %v740, %v749
      %v758 = vadd.f32 %v741, %v750
      %v759 = vadd.f32 %v742, %v751
      %v760 = vadd.f32 %v743, %v752
      %v761 = vadd.f32 %v744, %v753
      %v762 = vperm.slane %v484, 2
      %v763 = vmul.f32 %v762, 0.0
      %v764 = vmul.f32 %v587, %v762
      %v765 = vmul.f32 %v589, %v762
      %v766 = vmul.f32 %v591, %v762
      %v767 = vmul.f32 %v593, %v762
      %v768 = vmul.f32 %v595, %v762
      %v769 = vmul.f32 %v597, %v762
      %v770 = vmul.f32 %v599, %v762
      %v771 = vadd.f32 %v754, %v763
      %v772 = vadd.f32 %v755, %v764
      %v773 = vadd.f32 %v756, %v765
      %v774 = vadd.f32 %v757, %v766
      %v775 = vadd.f32 %v758, %v767
      %v776 = vadd.f32 %v759, %v768
      %v777 = vadd.f32 %v760, %v769
      %v778 = vadd.f32 %v761, %v770
      %v779 = vperm.slane %v486, 0
      %v780 = vmul.f32 %v578, %v779
      %v781 = vmul.f32 %v579, %v779
      %v782 = vmul.f32 %v580, %v779
      %v783 = vmul.f32 %v581, %v779
      %v784 = vmul.f32 %v582, %v779
      %v785 = vmul.f32 %v583, %v779
      %v786 = vmul.f32 %v584, %v779
      %v787 = vmul.f32 %v585, %v779
      %v788 = vadd.f32 %v771, %v780
      %v789 = vadd.f32 %v772, %v781
      %v790 = vadd.f32 %v773, %v782
      %v791 = vadd.f32 %v774, %v783
      %v792 = vadd.f32 %v775, %v784
      %v793 = vadd.f32 %v776, %v785
      %v794 = vadd.f32 %v777, %v786
      %v795 = vadd.f32 %v778, %v787
      %v796 = vperm.slane %v486, 2
      %798 = vrot.lane.b32.xlu0 %v796, 4
      %v799 = vpop.permute.xlu0 %798
      %v801 = vmul.f32 %v469, %v799
      %v802 = vmul.f32 %v471, %v799
      %v803 = vmul.f32 %v473, %v799
      %v804 = vmul.f32 %v475, %v799
      %v805 = vmul.f32 %v477, %v799
      %v806 = vmul.f32 %v479, %v799
      %v807 = vmul.f32 %v481, %v799
      %v808 = vmul.f32 %v483, %v799
      %817 = vrot.lane.b32.xlu0 %v801, 124
      %v818 = vpop.permute.xlu0 %817
      %819 = vrot.lane.b32.xlu0 %v802, 124
      %v820 = vpop.permute.xlu0 %819
      %821 = vrot.lane.b32.xlu0 %v803, 124
      %v822 = vpop.permute.xlu0 %821
      %823 = vrot.lane.b32.xlu0 %v804, 124
      %v824 = vpop.permute.xlu0 %823
      %825 = vrot.lane.b32.xlu0 %v805, 124
      %v826 = vpop.permute.xlu0 %825
      %827 = vrot.lane.b32.xlu0 %v806, 124
      %v828 = vpop.permute.xlu0 %827
      %829 = vrot.lane.b32.xlu0 %v807, 124
      %v830 = vpop.permute.xlu0 %829
      %831 = vrot.lane.b32.xlu0 %v808, 124
      %v832 = vpop.permute.xlu0 %831
      %v841 = vadd.f32 %v788, %v818
      %v842 = vadd.f32 %v789, %v820
      %v843 = vadd.f32 %v790, %v822
      %v844 = vadd.f32 %v791, %v824
      %v845 = vadd.f32 %v792, %v826
      %v846 = vadd.f32 %v793, %v828
      %v847 = vadd.f32 %v794, %v830
      %v848 = vadd.f32 %v795, %v832
      %v850 = vperm.slane %v487, 0
      %v852 = vmul.f32 %v841, %v850
      %v853 = vmul.f32 %v842, %v850
      %v854 = vmul.f32 %v843, %v850
      %v855 = vmul.f32 %v844, %v850
      %v856 = vmul.f32 %v845, %v850
      %v857 = vmul.f32 %v846, %v850
      %v858 = vmul.f32 %v847, %v850
      %v859 = vmul.f32 %v848, %v850
      %v861 = vperm.slane %v488, 0
      %v863 = vadd.f32 %v852, %v861
      %v864 = vadd.f32 %v853, %v861
      %v865 = vadd.f32 %v854, %v861
      %v866 = vadd.f32 %v855, %v861
      %v867 = vadd.f32 %v856, %v861
      %v868 = vadd.f32 %v857, %v861
      %v869 = vadd.f32 %v858, %v861
      %v870 = vadd.f32 %v859, %v861
      %v871 = vld [vmem:[%s4] sm:$0xf]
      %v872 = vld [vmem:[%s5] sm:$0x1]
      %v873 = vld [vmem:[%s6] sm:$0x1]
      %vm874 = vcmask 31744
      %v875 = vsel %vm874, %v468, 0
      %v877 = vsel %vm874, %v470, 0
      %v879 = vsel %vm874, %v472, 0
      %v881 = vsel %vm874, %v474, 0
      %v883 = vsel %vm874, %v476, 0
      %v885 = vsel %vm874, %v478, 0
      %v887 = vsel %vm874, %v480, 0
      %v889 = vsel %vm874, %v482, 0
      %vm891 = vcmask 1043456
      %v893 = vsel %vm891, %v871, 0
      %895 = vmatpush.msra.mxu0 0.0
      %896 = vmatpush.msra.mxu0 0.0
      %897 = vmatpush.msra.mxu0 0.0
      %898 = vmatpush.msra.mxu0 0.0
      %899 = vmatpush.msra.mxu0 0.0
      %900 = vmatpush.msra.mxu0 0.0
      %901 = vmatpush.msra.mxu0 0.0
      %902 = vmatpush.msra.mxu0 0.0
      %903 = vmatpush.msra.mxu0 0.0
      %904 = vmatpush.msra.mxu0 0.0
      %905 = vmatpush.msra.mxu0 0.0
      %906 = vmatpush.msra.mxu0 0.0
      %907 = vmatpush.msra.mxu0 0.0
      %908 = vmatpush.msra.mxu0 0.0
      %909 = vmatpush.msra.mxu0 0.0
      %910 = vmatpush.msra.mxu0 %v893
      %911 = vmatmul.f32.gmra.mxu0 %v875
      %v912 = vpop.f32.mrf.mxu0
      %v913 = vadd.f32 0.0, %v912
      %914 = vmatmul.f32.gmra.mxu0 %v877
      %v915 = vpop.f32.mrf.mxu0
      %v916 = vadd.f32 0.0, %v915
      %917 = vmatmul.f32.gmra.mxu0 %v879
      %v918 = vpop.f32.mrf.mxu0
      %v919 = vadd.f32 0.0, %v918
      %920 = vmatmul.f32.gmra.mxu0 %v881
      %v921 = vpop.f32.mrf.mxu0
      %v922 = vadd.f32 0.0, %v921
      %923 = vmatmul.f32.gmra.mxu0 %v883
      %v924 = vpop.f32.mrf.mxu0
      %v925 = vadd.f32 0.0, %v924
      %926 = vmatmul.f32.gmra.mxu0 %v885
      %v927 = vpop.f32.mrf.mxu0
      %v928 = vadd.f32 0.0, %v927
      %929 = vmatmul.f32.gmra.mxu0 %v887
      %v930 = vpop.f32.mrf.mxu0
      %v931 = vadd.f32 0.0, %v930
      %932 = vmatmul.f32.gmra.mxu0 %v889
      %v933 = vpop.f32.mrf.mxu0
      %v934 = vadd.f32 0.0, %v933
      %935 = vdwg.mxu0
      %v937 = vperm.slane %v872, 0
      %v939 = vmul.f32 %v913, %v937
      %v940 = vmul.f32 %v916, %v937
      %v941 = vmul.f32 %v919, %v937
      %v942 = vmul.f32 %v922, %v937
      %v943 = vmul.f32 %v925, %v937
      %v944 = vmul.f32 %v928, %v937
      %v945 = vmul.f32 %v931, %v937
      %v946 = vmul.f32 %v934, %v937
      %v948 = vperm.slane %v873, 0
      %v950 = vadd.f32 %v939, %v948
      %v951 = vadd.f32 %v940, %v948
      %v952 = vadd.f32 %v941, %v948
      %v953 = vadd.f32 %v942, %v948
      %v954 = vadd.f32 %v943, %v948
      %v955 = vadd.f32 %v944, %v948
      %v956 = vadd.f32 %v945, %v948
      %v957 = vadd.f32 %v946, %v948
      %v958 = vxor.u32 %v950, 2147483648
      %v959 = vxor.u32 %v951, 2147483648
      %v960 = vxor.u32 %v952, 2147483648
      %v961 = vxor.u32 %v953, 2147483648
      %v962 = vxor.u32 %v954, 2147483648
      %v963 = vxor.u32 %v955, 2147483648
      %v964 = vxor.u32 %v956, 2147483648
      %v965 = vxor.u32 %v957, 2147483648
      %v966 = vmul.f32 %v958, 1.442695
      %v967 = vpow.pop %v966
      %v968 = vmul.f32 %v959, 1.442695
      %v969 = vpow.pop %v968
      %v970 = vmul.f32 %v960, 1.442695
      %v971 = vpow.pop %v970
      %v972 = vmul.f32 %v961, 1.442695
      %v973 = vpow.pop %v972
      %v974 = vmul.f32 %v962, 1.442695
      %v975 = vpow.pop %v974
      %v976 = vmul.f32 %v963, 1.442695
      %v977 = vpow.pop %v976
      %v978 = vmul.f32 %v964, 1.442695
      %v979 = vpow.pop %v978
      %v980 = vmul.f32 %v965, 1.442695
      %v981 = vpow.pop %v980
      %v982 = vadd.f32 %v967, 1.0
      %v983 = vadd.f32 %v969, 1.0
      %v984 = vadd.f32 %v971, 1.0
      %v985 = vadd.f32 %v973, 1.0
      %v986 = vadd.f32 %v975, 1.0
      %v987 = vadd.f32 %v977, 1.0
      %v988 = vadd.f32 %v979, 1.0
      %v989 = vadd.f32 %v981, 1.0
      %v990 = vrcp.pop %v982
      %v991 = vmul.f32 %v982, %v990
      %v992 = vsub.f32 1.0, %v991
      %v993 = vmul.f32 %v990, %v992
      %v994 = vadd.f32 %v990, %v993
      %vm995 = vweird.f32 %v982
      %vm996 = vweird.f32 %v990
      %vm997 = vmor %vm995, %vm996
      %v998 = vsel %vm997, %v990, %v994
      %v999 = vand.u32 2147483647, %v982
      %vm1000 = vcmp.eq.f32.partialorder %v999, 8.507059e+37
      %v1001 = vand.u32 %v982, 2147483648
      %v1002 = vor.u32 1.1754944e-38, %v1001
      %v1003 = vsel %vm1000, %v1002, %v998
      %v1004 = vmul.f32 1.0, %v1003
      %v1005 = vrcp.pop %v983
      %v1006 = vmul.f32 %v983, %v1005
      %v1007 = vsub.f32 1.0, %v1006
      %v1008 = vmul.f32 %v1005, %v1007
      %v1009 = vadd.f32 %v1005, %v1008
      %vm1010 = vweird.f32 %v983
      %vm1011 = vweird.f32 %v1005
      %vm1012 = vmor %vm1010, %vm1011
      %v1013 = vsel %vm1012, %v1005, %v1009
      %v1014 = vand.u32 2147483647, %v983
      %vm1015 = vcmp.eq.f32.partialorder %v1014, 8.507059e+37
      %v1016 = vand.u32 %v983, 2147483648
      %v1017 = vor.u32 1.1754944e-38, %v1016
      %v1018 = vsel %vm1015, %v1017, %v1013
      %v1019 = vmul.f32 1.0, %v1018
      %v1020 = vrcp.pop %v984
      %v1021 = vmul.f32 %v984, %v1020
      %v1022 = vsub.f32 1.0, %v1021
      %v1023 = vmul.f32 %v1020, %v1022
      %v1024 = vadd.f32 %v1020, %v1023
      %vm1025 = vweird.f32 %v984
      %vm1026 = vweird.f32 %v1020
      %vm1027 = vmor %vm1025, %vm1026
      %v1028 = vsel %vm1027, %v1020, %v1024
      %v1029 = vand.u32 2147483647, %v984
      %vm1030 = vcmp.eq.f32.partialorder %v1029, 8.507059e+37
      %v1031 = vand.u32 %v984, 2147483648
      %v1032 = vor.u32 1.1754944e-38, %v1031
      %v1033 = vsel %vm1030, %v1032, %v1028
      %v1034 = vmul.f32 1.0, %v1033
      %v1035 = vrcp.pop %v985
      %v1036 = vmul.f32 %v985, %v1035
      %v1037 = vsub.f32 1.0, %v1036
      %v1038 = vmul.f32 %v1035, %v1037
      %v1039 = vadd.f32 %v1035, %v1038
      %vm1040 = vweird.f32 %v985
      %vm1041 = vweird.f32 %v1035
      %vm1042 = vmor %vm1040, %vm1041
      %v1043 = vsel %vm1042, %v1035, %v1039
      %v1044 = vand.u32 2147483647, %v985
      %vm1045 = vcmp.eq.f32.partialorder %v1044, 8.507059e+37
      %v1046 = vand.u32 %v985, 2147483648
      %v1047 = vor.u32 1.1754944e-38, %v1046
      %v1048 = vsel %vm1045, %v1047, %v1043
      %v1049 = vmul.f32 1.0, %v1048
      %v1050 = vrcp.pop %v986
      %v1051 = vmul.f32 %v986, %v1050
      %v1052 = vsub.f32 1.0, %v1051
      %v1053 = vmul.f32 %v1050, %v1052
      %v1054 = vadd.f32 %v1050, %v1053
      %vm1055 = vweird.f32 %v986
      %vm1056 = vweird.f32 %v1050
      %vm1057 = vmor %vm1055, %vm1056
      %v1058 = vsel %vm1057, %v1050, %v1054
      %v1059 = vand.u32 2147483647, %v986
      %vm1060 = vcmp.eq.f32.partialorder %v1059, 8.507059e+37
      %v1061 = vand.u32 %v986, 2147483648
      %v1062 = vor.u32 1.1754944e-38, %v1061
      %v1063 = vsel %vm1060, %v1062, %v1058
      %v1064 = vmul.f32 1.0, %v1063
      %v1065 = vrcp.pop %v987
      %v1066 = vmul.f32 %v987, %v1065
      %v1067 = vsub.f32 1.0, %v1066
      %v1068 = vmul.f32 %v1065, %v1067
      %v1069 = vadd.f32 %v1065, %v1068
      %vm1070 = vweird.f32 %v987
      %vm1071 = vweird.f32 %v1065
      %vm1072 = vmor %vm1070, %vm1071
      %v1073 = vsel %vm1072, %v1065, %v1069
      %v1074 = vand.u32 2147483647, %v987
      %vm1075 = vcmp.eq.f32.partialorder %v1074, 8.507059e+37
      %v1076 = vand.u32 %v987, 2147483648
      %v1077 = vor.u32 1.1754944e-38, %v1076
      %v1078 = vsel %vm1075, %v1077, %v1073
      %v1079 = vmul.f32 1.0, %v1078
      %v1080 = vrcp.pop %v988
      %v1081 = vmul.f32 %v988, %v1080
      %v1082 = vsub.f32 1.0, %v1081
      %v1083 = vmul.f32 %v1080, %v1082
      %v1084 = vadd.f32 %v1080, %v1083
      %vm1085 = vweird.f32 %v988
      %vm1086 = vweird.f32 %v1080
      %vm1087 = vmor %vm1085, %vm1086
      %v1088 = vsel %vm1087, %v1080, %v1084
      %v1089 = vand.u32 2147483647, %v988
      %vm1090 = vcmp.eq.f32.partialorder %v1089, 8.507059e+37
      %v1091 = vand.u32 %v988, 2147483648
      %v1092 = vor.u32 1.1754944e-38, %v1091
      %v1093 = vsel %vm1090, %v1092, %v1088
      %v1094 = vmul.f32 1.0, %v1093
      %v1095 = vrcp.pop %v989
      %v1096 = vmul.f32 %v989, %v1095
      %v1097 = vsub.f32 1.0, %v1096
      %v1098 = vmul.f32 %v1095, %v1097
      %v1099 = vadd.f32 %v1095, %v1098
      %vm1100 = vweird.f32 %v989
      %vm1101 = vweird.f32 %v1095
      %vm1102 = vmor %vm1100, %vm1101
      %v1103 = vsel %vm1102, %v1095, %v1099
      %v1104 = vand.u32 2147483647, %v989
      %vm1105 = vcmp.eq.f32.partialorder %v1104, 8.507059e+37
      %v1106 = vand.u32 %v989, 2147483648
      %v1107 = vor.u32 1.1754944e-38, %v1106
      %v1108 = vsel %vm1105, %v1107, %v1103
      %v1109 = vmul.f32 1.0, %v1108
      %v1110 = vmul.f32 %v950, %v1004
      %v1111 = vmul.f32 %v951, %v1019
      %v1112 = vmul.f32 %v952, %v1034
      %v1113 = vmul.f32 %v953, %v1049
      %v1114 = vmul.f32 %v954, %v1064
      %v1115 = vmul.f32 %v955, %v1079
      %v1116 = vmul.f32 %v956, %v1094
      %v1117 = vmul.f32 %v957, %v1109
      %1118 = vrot.lane.b32.xlu0 %v468, 124
      %v1119 = vpop.permute.xlu0 %1118
      %1120 = vrot.lane.b32.xlu0 %v470, 124
      %v1121 = vpop.permute.xlu0 %1120
      %1122 = vrot.lane.b32.xlu0 %v472, 124
      %v1123 = vpop.permute.xlu0 %1122
      %1124 = vrot.lane.b32.xlu0 %v474, 124
      %v1125 = vpop.permute.xlu0 %1124
      %1126 = vrot.lane.b32.xlu0 %v476, 124
      %v1127 = vpop.permute.xlu0 %1126
      %1128 = vrot.lane.b32.xlu0 %v478, 124
      %v1129 = vpop.permute.xlu0 %1128
      %1130 = vrot.lane.b32.xlu0 %v480, 124
      %v1131 = vpop.permute.xlu0 %1130
      %1132 = vrot.lane.b32.xlu0 %v482, 124
      %v1133 = vpop.permute.xlu0 %1132
      %v1134 = vsel %vm874, %v1119, 0
      %v1136 = vsel %vm874, %v1121, 0
      %v1138 = vsel %vm874, %v1123, 0
      %v1140 = vsel %vm874, %v1125, 0
      %v1142 = vsel %vm874, %v1127, 0
      %v1144 = vsel %vm874, %v1129, 0
      %v1146 = vsel %vm874, %v1131, 0
      %v1148 = vsel %vm874, %v1133, 0
      %1150 = vmatpush.msra.mxu0 0.0
      %1151 = vmatpush.msra.mxu0 0.0
      %1152 = vmatpush.msra.mxu0 0.0
      %1153 = vmatpush.msra.mxu0 0.0
      %1154 = vmatpush.msra.mxu0 0.0
      %1155 = vmatpush.msra.mxu0 0.0
      %1156 = vmatpush.msra.mxu0 0.0
      %1157 = vmatpush.msra.mxu0 0.0
      %1158 = vmatpush.msra.mxu0 0.0
      %1159 = vmatpush.msra.mxu0 0.0
      %1160 = vmatpush.msra.mxu0 0.0
      %1161 = vmatpush.msra.mxu0 0.0
      %1162 = vmatpush.msra.mxu0 0.0
      %1163 = vmatpush.msra.mxu0 0.0
      %1164 = vmatpush.msra.mxu0 0.0
      %1165 = vmatpush.msra.mxu0 %v893
      %1166 = vmatmul.f32.gmra.mxu0 %v1134
      %v1167 = vpop.f32.mrf.mxu0
      %v1168 = vadd.f32 0.0, %v1167
      %1169 = vmatmul.f32.gmra.mxu0 %v1136
      %v1170 = vpop.f32.mrf.mxu0
      %v1171 = vadd.f32 0.0, %v1170
      %1172 = vmatmul.f32.gmra.mxu0 %v1138
      %v1173 = vpop.f32.mrf.mxu0
      %v1174 = vadd.f32 0.0, %v1173
      %1175 = vmatmul.f32.gmra.mxu0 %v1140
      %v1176 = vpop.f32.mrf.mxu0
      %v1177 = vadd.f32 0.0, %v1176
      %1178 = vmatmul.f32.gmra.mxu0 %v1142
      %v1179 = vpop.f32.mrf.mxu0
      %v1180 = vadd.f32 0.0, %v1179
      %1181 = vmatmul.f32.gmra.mxu0 %v1144
      %v1182 = vpop.f32.mrf.mxu0
      %v1183 = vadd.f32 0.0, %v1182
      %1184 = vmatmul.f32.gmra.mxu0 %v1146
      %v1185 = vpop.f32.mrf.mxu0
      %v1186 = vadd.f32 0.0, %v1185
      %1187 = vmatmul.f32.gmra.mxu0 %v1148
      %v1188 = vpop.f32.mrf.mxu0
      %v1189 = vadd.f32 0.0, %v1188
      %1190 = vdwg.mxu0
      %v1191 = vmul.f32 %v1168, %v937
      %v1192 = vmul.f32 %v1171, %v937
      %v1193 = vmul.f32 %v1174, %v937
      %v1194 = vmul.f32 %v1177, %v937
      %v1195 = vmul.f32 %v1180, %v937
      %v1196 = vmul.f32 %v1183, %v937
      %v1197 = vmul.f32 %v1186, %v937
      %v1198 = vmul.f32 %v1189, %v937
      %v1199 = vadd.f32 %v1191, %v948
      %v1200 = vadd.f32 %v1192, %v948
      %v1201 = vadd.f32 %v1193, %v948
      %v1202 = vadd.f32 %v1194, %v948
      %v1203 = vadd.f32 %v1195, %v948
      %v1204 = vadd.f32 %v1196, %v948
      %v1205 = vadd.f32 %v1197, %v948
      %v1206 = vadd.f32 %v1198, %v948
      %v1207 = vxor.u32 %v1199, 2147483648
      %v1208 = vxor.u32 %v1200, 2147483648
      %v1209 = vxor.u32 %v1201, 2147483648
      %v1210 = vxor.u32 %v1202, 2147483648
      %v1211 = vxor.u32 %v1203, 2147483648
      %v1212 = vxor.u32 %v1204, 2147483648
      %v1213 = vxor.u32 %v1205, 2147483648
      %v1214 = vxor.u32 %v1206, 2147483648
      %v1215 = vmul.f32 %v1207, 1.442695
      %v1216 = vpow.pop %v1215
      %v1217 = vmul.f32 %v1208, 1.442695
      %v1218 = vpow.pop %v1217
      %v1219 = vmul.f32 %v1209, 1.442695
      %v1220 = vpow.pop %v1219
      %v1221 = vmul.f32 %v1210, 1.442695
      %v1222 = vpow.pop %v1221
      %v1223 = vmul.f32 %v1211, 1.442695
      %v1224 = vpow.pop %v1223
      %v1225 = vmul.f32 %v1212, 1.442695
      %v1226 = vpow.pop %v1225
      %v1227 = vmul.f32 %v1213, 1.442695
      %v1228 = vpow.pop %v1227
      %v1229 = vmul.f32 %v1214, 1.442695
      %v1230 = vpow.pop %v1229
      %v1231 = vadd.f32 %v1216, 1.0
      %v1232 = vadd.f32 %v1218, 1.0
      %v1233 = vadd.f32 %v1220, 1.0
      %v1234 = vadd.f32 %v1222, 1.0
      %v1235 = vadd.f32 %v1224, 1.0
      %v1236 = vadd.f32 %v1226, 1.0
      %v1237 = vadd.f32 %v1228, 1.0
      %v1238 = vadd.f32 %v1230, 1.0
      %v1239 = vrcp.pop %v1231
      %v1240 = vmul.f32 %v1231, %v1239
      %v1241 = vsub.f32 1.0, %v1240
      %v1242 = vmul.f32 %v1239, %v1241
      %v1243 = vadd.f32 %v1239, %v1242
      %vm1244 = vweird.f32 %v1231
      %vm1245 = vweird.f32 %v1239
      %vm1246 = vmor %vm1244, %vm1245
      %v1247 = vsel %vm1246, %v1239, %v1243
      %v1248 = vand.u32 2147483647, %v1231
      %vm1249 = vcmp.eq.f32.partialorder %v1248, 8.507059e+37
      %v1250 = vand.u32 %v1231, 2147483648
      %v1251 = vor.u32 1.1754944e-38, %v1250
      %v1252 = vsel %vm1249, %v1251, %v1247
      %v1253 = vmul.f32 1.0, %v1252
      %v1254 = vrcp.pop %v1232
      %v1255 = vmul.f32 %v1232, %v1254
      %v1256 = vsub.f32 1.0, %v1255
      %v1257 = vmul.f32 %v1254, %v1256
      %v1258 = vadd.f32 %v1254, %v1257
      %vm1259 = vweird.f32 %v1232
      %vm1260 = vweird.f32 %v1254
      %vm1261 = vmor %vm1259, %vm1260
      %v1262 = vsel %vm1261, %v1254, %v1258
      %v1263 = vand.u32 2147483647, %v1232
      %vm1264 = vcmp.eq.f32.partialorder %v1263, 8.507059e+37
      %v1265 = vand.u32 %v1232, 2147483648
      %v1266 = vor.u32 1.1754944e-38, %v1265
      %v1267 = vsel %vm1264, %v1266, %v1262
      %v1268 = vmul.f32 1.0, %v1267
      %v1269 = vrcp.pop %v1233
      %v1270 = vmul.f32 %v1233, %v1269
      %v1271 = vsub.f32 1.0, %v1270
      %v1272 = vmul.f32 %v1269, %v1271
      %v1273 = vadd.f32 %v1269, %v1272
      %vm1274 = vweird.f32 %v1233
      %vm1275 = vweird.f32 %v1269
      %vm1276 = vmor %vm1274, %vm1275
      %v1277 = vsel %vm1276, %v1269, %v1273
      %v1278 = vand.u32 2147483647, %v1233
      %vm1279 = vcmp.eq.f32.partialorder %v1278, 8.507059e+37
      %v1280 = vand.u32 %v1233, 2147483648
      %v1281 = vor.u32 1.1754944e-38, %v1280
      %v1282 = vsel %vm1279, %v1281, %v1277
      %v1283 = vmul.f32 1.0, %v1282
      %v1284 = vrcp.pop %v1234
      %v1285 = vmul.f32 %v1234, %v1284
      %v1286 = vsub.f32 1.0, %v1285
      %v1287 = vmul.f32 %v1284, %v1286
      %v1288 = vadd.f32 %v1284, %v1287
      %vm1289 = vweird.f32 %v1234
      %vm1290 = vweird.f32 %v1284
      %vm1291 = vmor %vm1289, %vm1290
      %v1292 = vsel %vm1291, %v1284, %v1288
      %v1293 = vand.u32 2147483647, %v1234
      %vm1294 = vcmp.eq.f32.partialorder %v1293, 8.507059e+37
      %v1295 = vand.u32 %v1234, 2147483648
      %v1296 = vor.u32 1.1754944e-38, %v1295
      %v1297 = vsel %vm1294, %v1296, %v1292
      %v1298 = vmul.f32 1.0, %v1297
      %v1299 = vrcp.pop %v1235
      %v1300 = vmul.f32 %v1235, %v1299
      %v1301 = vsub.f32 1.0, %v1300
      %v1302 = vmul.f32 %v1299, %v1301
      %v1303 = vadd.f32 %v1299, %v1302
      %vm1304 = vweird.f32 %v1235
      %vm1305 = vweird.f32 %v1299
      %vm1306 = vmor %vm1304, %vm1305
      %v1307 = vsel %vm1306, %v1299, %v1303
      %v1308 = vand.u32 2147483647, %v1235
      %vm1309 = vcmp.eq.f32.partialorder %v1308, 8.507059e+37
      %v1310 = vand.u32 %v1235, 2147483648
      %v1311 = vor.u32 1.1754944e-38, %v1310
      %v1312 = vsel %vm1309, %v1311, %v1307
      %v1313 = vmul.f32 1.0, %v1312
      %v1314 = vrcp.pop %v1236
      %v1315 = vmul.f32 %v1236, %v1314
      %v1316 = vsub.f32 1.0, %v1315
      %v1317 = vmul.f32 %v1314, %v1316
      %v1318 = vadd.f32 %v1314, %v1317
      %vm1319 = vweird.f32 %v1236
      %vm1320 = vweird.f32 %v1314
      %vm1321 = vmor %vm1319, %vm1320
      %v1322 = vsel %vm1321, %v1314, %v1318
      %v1323 = vand.u32 2147483647, %v1236
      %vm1324 = vcmp.eq.f32.partialorder %v1323, 8.507059e+37
      %v1325 = vand.u32 %v1236, 2147483648
      %v1326 = vor.u32 1.1754944e-38, %v1325
      %v1327 = vsel %vm1324, %v1326, %v1322
      %v1328 = vmul.f32 1.0, %v1327
      %v1329 = vrcp.pop %v1237
      %v1330 = vmul.f32 %v1237, %v1329
      %v1331 = vsub.f32 1.0, %v1330
      %v1332 = vmul.f32 %v1329, %v1331
      %v1333 = vadd.f32 %v1329, %v1332
      %vm1334 = vweird.f32 %v1237
      %vm1335 = vweird.f32 %v1329
      %vm1336 = vmor %vm1334, %vm1335
      %v1337 = vsel %vm1336, %v1329, %v1333
      %v1338 = vand.u32 2147483647, %v1237
      %vm1339 = vcmp.eq.f32.partialorder %v1338, 8.507059e+37
      %v1340 = vand.u32 %v1237, 2147483648
      %v1341 = vor.u32 1.1754944e-38, %v1340
      %v1342 = vsel %vm1339, %v1341, %v1337
      %v1343 = vmul.f32 1.0, %v1342
      %v1344 = vrcp.pop %v1238
      %v1345 = vmul.f32 %v1238, %v1344
      %v1346 = vsub.f32 1.0, %v1345
      %v1347 = vmul.f32 %v1344, %v1346
      %v1348 = vadd.f32 %v1344, %v1347
      %vm1349 = vweird.f32 %v1238
      %vm1350 = vweird.f32 %v1344
      %vm1351 = vmor %vm1349, %vm1350
      %v1352 = vsel %vm1351, %v1344, %v1348
      %v1353 = vand.u32 2147483647, %v1238
      %vm1354 = vcmp.eq.f32.partialorder %v1353, 8.507059e+37
      %v1355 = vand.u32 %v1238, 2147483648
      %v1356 = vor.u32 1.1754944e-38, %v1355
      %v1357 = vsel %vm1354, %v1356, %v1352
      %v1358 = vmul.f32 1.0, %v1357
      %v1359 = vmul.f32 %v1199, %v1253
      %v1360 = vmul.f32 %v1200, %v1268
      %v1361 = vmul.f32 %v1201, %v1283
      %v1362 = vmul.f32 %v1202, %v1298
      %v1363 = vmul.f32 %v1203, %v1313
      %v1364 = vmul.f32 %v1204, %v1328
      %v1365 = vmul.f32 %v1205, %v1343
      %v1366 = vmul.f32 %v1206, %v1358
      %v1367 = vsel %vm874, %v469, 0
      %v1369 = vsel %vm874, %v471, 0
      %v1371 = vsel %vm874, %v473, 0
      %v1373 = vsel %vm874, %v475, 0
      %v1375 = vsel %vm874, %v477, 0
      %v1377 = vsel %vm874, %v479, 0
      %v1379 = vsel %vm874, %v481, 0
      %v1381 = vsel %vm874, %v483, 0
      %1383 = vmatpush.msra.mxu0 0.0
      %1384 = vmatpush.msra.mxu0 0.0
      %1385 = vmatpush.msra.mxu0 0.0
      %1386 = vmatpush.msra.mxu0 0.0
      %1387 = vmatpush.msra.mxu0 0.0
      %1388 = vmatpush.msra.mxu0 0.0
      %1389 = vmatpush.msra.mxu0 0.0
      %1390 = vmatpush.msra.mxu0 0.0
      %1391 = vmatpush.msra.mxu0 0.0
      %1392 = vmatpush.msra.mxu0 0.0
      %1393 = vmatpush.msra.mxu0 0.0
      %1394 = vmatpush.msra.mxu0 0.0
      %1395 = vmatpush.msra.mxu0 0.0
      %1396 = vmatpush.msra.mxu0 0.0
      %1397 = vmatpush.msra.mxu0 0.0
      %1398 = vmatpush.msra.mxu0 %v893
      %1399 = vmatmul.f32.gmra.mxu0 %v1367
      %v1400 = vpop.f32.mrf.mxu0
      %v1401 = vadd.f32 0.0, %v1400
      %1402 = vmatmul.f32.gmra.mxu0 %v1369
      %v1403 = vpop.f32.mrf.mxu0
      %v1404 = vadd.f32 0.0, %v1403
      %1405 = vmatmul.f32.gmra.mxu0 %v1371
      %v1406 = vpop.f32.mrf.mxu0
      %v1407 = vadd.f32 0.0, %v1406
      %1408 = vmatmul.f32.gmra.mxu0 %v1373
      %v1409 = vpop.f32.mrf.mxu0
      %v1410 = vadd.f32 0.0, %v1409
      %1411 = vmatmul.f32.gmra.mxu0 %v1375
      %v1412 = vpop.f32.mrf.mxu0
      %v1413 = vadd.f32 0.0, %v1412
      %1414 = vmatmul.f32.gmra.mxu0 %v1377
      %v1415 = vpop.f32.mrf.mxu0
      %v1416 = vadd.f32 0.0, %v1415
      %1417 = vmatmul.f32.gmra.mxu0 %v1379
      %v1418 = vpop.f32.mrf.mxu0
      %v1419 = vadd.f32 0.0, %v1418
      %1420 = vmatmul.f32.gmra.mxu0 %v1381
      %v1421 = vpop.f32.mrf.mxu0
      %v1422 = vadd.f32 0.0, %v1421
      %1423 = vdwg.mxu0
      %v1424 = vmul.f32 %v1401, %v937
      %v1425 = vmul.f32 %v1404, %v937
      %v1426 = vmul.f32 %v1407, %v937
      %v1427 = vmul.f32 %v1410, %v937
      %v1428 = vmul.f32 %v1413, %v937
      %v1429 = vmul.f32 %v1416, %v937
      %v1430 = vmul.f32 %v1419, %v937
      %v1431 = vmul.f32 %v1422, %v937
      %v1432 = vadd.f32 %v1424, %v948
      %v1433 = vadd.f32 %v1425, %v948
      %v1434 = vadd.f32 %v1426, %v948
      %v1435 = vadd.f32 %v1427, %v948
      %v1436 = vadd.f32 %v1428, %v948
      %v1437 = vadd.f32 %v1429, %v948
      %v1438 = vadd.f32 %v1430, %v948
      %v1439 = vadd.f32 %v1431, %v948
      %v1440 = vxor.u32 %v1432, 2147483648
      %v1441 = vxor.u32 %v1433, 2147483648
      %v1442 = vxor.u32 %v1434, 2147483648
      %v1443 = vxor.u32 %v1435, 2147483648
      %v1444 = vxor.u32 %v1436, 2147483648
      %v1445 = vxor.u32 %v1437, 2147483648
      %v1446 = vxor.u32 %v1438, 2147483648
      %v1447 = vxor.u32 %v1439, 2147483648
      %v1448 = vmul.f32 %v1440, 1.442695
      %v1449 = vpow.pop %v1448
      %v1450 = vmul.f32 %v1441, 1.442695
      %v1451 = vpow.pop %v1450
      %v1452 = vmul.f32 %v1442, 1.442695
      %v1453 = vpow.pop %v1452
      %v1454 = vmul.f32 %v1443, 1.442695
      %v1455 = vpow.pop %v1454
      %v1456 = vmul.f32 %v1444, 1.442695
      %v1457 = vpow.pop %v1456
      %v1458 = vmul.f32 %v1445, 1.442695
      %v1459 = vpow.pop %v1458
      %v1460 = vmul.f32 %v1446, 1.442695
      %v1461 = vpow.pop %v1460
      %v1462 = vmul.f32 %v1447, 1.442695
      %v1463 = vpow.pop %v1462
      %v1464 = vadd.f32 %v1449, 1.0
      %v1465 = vadd.f32 %v1451, 1.0
      %v1466 = vadd.f32 %v1453, 1.0
      %v1467 = vadd.f32 %v1455, 1.0
      %v1468 = vadd.f32 %v1457, 1.0
      %v1469 = vadd.f32 %v1459, 1.0
      %v1470 = vadd.f32 %v1461, 1.0
      %v1471 = vadd.f32 %v1463, 1.0
      %v1472 = vrcp.pop %v1464
      %v1473 = vmul.f32 %v1464, %v1472
      %v1474 = vsub.f32 1.0, %v1473
      %v1475 = vmul.f32 %v1472, %v1474
      %v1476 = vadd.f32 %v1472, %v1475
      %vm1477 = vweird.f32 %v1464
      %vm1478 = vweird.f32 %v1472
      %vm1479 = vmor %vm1477, %vm1478
      %v1480 = vsel %vm1479, %v1472, %v1476
      %v1481 = vand.u32 2147483647, %v1464
      %vm1482 = vcmp.eq.f32.partialorder %v1481, 8.507059e+37
      %v1483 = vand.u32 %v1464, 2147483648
      %v1484 = vor.u32 1.1754944e-38, %v1483
      %v1485 = vsel %vm1482, %v1484, %v1480
      %v1486 = vmul.f32 1.0, %v1485
      %v1487 = vrcp.pop %v1465
      %v1488 = vmul.f32 %v1465, %v1487
      %v1489 = vsub.f32 1.0, %v1488
      %v1490 = vmul.f32 %v1487, %v1489
      %v1491 = vadd.f32 %v1487, %v1490
      %vm1492 = vweird.f32 %v1465
      %vm1493 = vweird.f32 %v1487
      %vm1494 = vmor %vm1492, %vm1493
      %v1495 = vsel %vm1494, %v1487, %v1491
      %v1496 = vand.u32 2147483647, %v1465
      %vm1497 = vcmp.eq.f32.partialorder %v1496, 8.507059e+37
      %v1498 = vand.u32 %v1465, 2147483648
      %v1499 = vor.u32 1.1754944e-38, %v1498
      %v1500 = vsel %vm1497, %v1499, %v1495
      %v1501 = vmul.f32 1.0, %v1500
      %v1502 = vrcp.pop %v1466
      %v1503 = vmul.f32 %v1466, %v1502
      %v1504 = vsub.f32 1.0, %v1503
      %v1505 = vmul.f32 %v1502, %v1504
      %v1506 = vadd.f32 %v1502, %v1505
      %vm1507 = vweird.f32 %v1466
      %vm1508 = vweird.f32 %v1502
      %vm1509 = vmor %vm1507, %vm1508
      %v1510 = vsel %vm1509, %v1502, %v1506
      %v1511 = vand.u32 2147483647, %v1466
      %vm1512 = vcmp.eq.f32.partialorder %v1511, 8.507059e+37
      %v1513 = vand.u32 %v1466, 2147483648
      %v1514 = vor.u32 1.1754944e-38, %v1513
      %v1515 = vsel %vm1512, %v1514, %v1510
      %v1516 = vmul.f32 1.0, %v1515
      %v1517 = vrcp.pop %v1467
      %v1518 = vmul.f32 %v1467, %v1517
      %v1519 = vsub.f32 1.0, %v1518
      %v1520 = vmul.f32 %v1517, %v1519
      %v1521 = vadd.f32 %v1517, %v1520
      %vm1522 = vweird.f32 %v1467
      %vm1523 = vweird.f32 %v1517
      %vm1524 = vmor %vm1522, %vm1523
      %v1525 = vsel %vm1524, %v1517, %v1521
      %v1526 = vand.u32 2147483647, %v1467
      %vm1527 = vcmp.eq.f32.partialorder %v1526, 8.507059e+37
      %v1528 = vand.u32 %v1467, 2147483648
      %v1529 = vor.u32 1.1754944e-38, %v1528
      %v1530 = vsel %vm1527, %v1529, %v1525
      %v1531 = vmul.f32 1.0, %v1530
      %v1532 = vrcp.pop %v1468
      %v1533 = vmul.f32 %v1468, %v1532
      %v1534 = vsub.f32 1.0, %v1533
      %v1535 = vmul.f32 %v1532, %v1534
      %v1536 = vadd.f32 %v1532, %v1535
      %vm1537 = vweird.f32 %v1468
      %vm1538 = vweird.f32 %v1532
      %vm1539 = vmor %vm1537, %vm1538
      %v1540 = vsel %vm1539, %v1532, %v1536
      %v1541 = vand.u32 2147483647, %v1468
      %vm1542 = vcmp.eq.f32.partialorder %v1541, 8.507059e+37
      %v1543 = vand.u32 %v1468, 2147483648
      %v1544 = vor.u32 1.1754944e-38, %v1543
      %v1545 = vsel %vm1542, %v1544, %v1540
      %v1546 = vmul.f32 1.0, %v1545
      %v1547 = vrcp.pop %v1469
      %v1548 = vmul.f32 %v1469, %v1547
      %v1549 = vsub.f32 1.0, %v1548
      %v1550 = vmul.f32 %v1547, %v1549
      %v1551 = vadd.f32 %v1547, %v1550
      %vm1552 = vweird.f32 %v1469
      %vm1553 = vweird.f32 %v1547
      %vm1554 = vmor %vm1552, %vm1553
      %v1555 = vsel %vm1554, %v1547, %v1551
      %v1556 = vand.u32 2147483647, %v1469
      %vm1557 = vcmp.eq.f32.partialorder %v1556, 8.507059e+37
      %v1558 = vand.u32 %v1469, 2147483648
      %v1559 = vor.u32 1.1754944e-38, %v1558
      %v1560 = vsel %vm1557, %v1559, %v1555
      %v1561 = vmul.f32 1.0, %v1560
      %v1562 = vrcp.pop %v1470
      %v1563 = vmul.f32 %v1470, %v1562
      %v1564 = vsub.f32 1.0, %v1563
      %v1565 = vmul.f32 %v1562, %v1564
      %v1566 = vadd.f32 %v1562, %v1565
      %vm1567 = vweird.f32 %v1470
      %vm1568 = vweird.f32 %v1562
      %vm1569 = vmor %vm1567, %vm1568
      %v1570 = vsel %vm1569, %v1562, %v1566
      %v1571 = vand.u32 2147483647, %v1470
      %vm1572 = vcmp.eq.f32.partialorder %v1571, 8.507059e+37
      %v1573 = vand.u32 %v1470, 2147483648
      %v1574 = vor.u32 1.1754944e-38, %v1573
      %v1575 = vsel %vm1572, %v1574, %v1570
      %v1576 = vmul.f32 1.0, %v1575
      %v1577 = vrcp.pop %v1471
      %v1578 = vmul.f32 %v1471, %v1577
      %v1579 = vsub.f32 1.0, %v1578
      %v1580 = vmul.f32 %v1577, %v1579
      %v1581 = vadd.f32 %v1577, %v1580
      %vm1582 = vweird.f32 %v1471
      %vm1583 = vweird.f32 %v1577
      %vm1584 = vmor %vm1582, %vm1583
      %v1585 = vsel %vm1584, %v1577, %v1581
      %v1586 = vand.u32 2147483647, %v1471
      %vm1587 = vcmp.eq.f32.partialorder %v1586, 8.507059e+37
      %v1588 = vand.u32 %v1471, 2147483648
      %v1589 = vor.u32 1.1754944e-38, %v1588
      %v1590 = vsel %vm1587, %v1589, %v1585
      %v1591 = vmul.f32 1.0, %v1590
      %v1592 = vmul.f32 %v1432, %v1486
      %v1593 = vmul.f32 %v1433, %v1501
      %v1594 = vmul.f32 %v1434, %v1516
      %v1595 = vmul.f32 %v1435, %v1531
      %v1596 = vmul.f32 %v1436, %v1546
      %v1597 = vmul.f32 %v1437, %v1561
      %v1598 = vmul.f32 %v1438, %v1576
      %v1599 = vmul.f32 %v1439, %v1591
      %1600 = vrot.lane.b32.xlu0 %v483, 124
      %v1601 = vpop.permute.xlu0 %1600
      %v1602 = vsel %vm874, %v587, 0
      %v1604 = vsel %vm874, %v589, 0
      %v1606 = vsel %vm874, %v591, 0
      %v1608 = vsel %vm874, %v593, 0
      %v1610 = vsel %vm874, %v595, 0
      %v1612 = vsel %vm874, %v597, 0
      %v1614 = vsel %vm874, %v599, 0
      %v1616 = vsel %vm874, %v1601, 0
      %1618 = vmatpush.msra.mxu0 0.0
      %1619 = vmatpush.msra.mxu0 0.0
      %1620 = vmatpush.msra.mxu0 0.0
      %1621 = vmatpush.msra.mxu0 0.0
      %1622 = vmatpush.msra.mxu0 0.0
      %1623 = vmatpush.msra.mxu0 0.0
      %1624 = vmatpush.msra.mxu0 0.0
      %1625 = vmatpush.msra.mxu0 0.0
      %1626 = vmatpush.msra.mxu0 0.0
      %1627 = vmatpush.msra.mxu0 0.0
      %1628 = vmatpush.msra.mxu0 0.0
      %1629 = vmatpush.msra.mxu0 0.0
      %1630 = vmatpush.msra.mxu0 0.0
      %1631 = vmatpush.msra.mxu0 0.0
      %1632 = vmatpush.msra.mxu0 0.0
      %1633 = vmatpush.msra.mxu0 %v893
      %1634 = vmatmul.f32.gmra.mxu0 %v1602
      %v1635 = vpop.f32.mrf.mxu0
      %v1636 = vadd.f32 0.0, %v1635
      %1637 = vmatmul.f32.gmra.mxu0 %v1604
      %v1638 = vpop.f32.mrf.mxu0
      %v1639 = vadd.f32 0.0, %v1638
      %1640 = vmatmul.f32.gmra.mxu0 %v1606
      %v1641 = vpop.f32.mrf.mxu0
      %v1642 = vadd.f32 0.0, %v1641
      %1643 = vmatmul.f32.gmra.mxu0 %v1608
      %v1644 = vpop.f32.mrf.mxu0
      %v1645 = vadd.f32 0.0, %v1644
      %1646 = vmatmul.f32.gmra.mxu0 %v1610
      %v1647 = vpop.f32.mrf.mxu0
      %v1648 = vadd.f32 0.0, %v1647
      %1649 = vmatmul.f32.gmra.mxu0 %v1612
      %v1650 = vpop.f32.mrf.mxu0
      %v1651 = vadd.f32 0.0, %v1650
      %1652 = vmatmul.f32.gmra.mxu0 %v1614
      %v1653 = vpop.f32.mrf.mxu0
      %v1654 = vadd.f32 0.0, %v1653
      %1655 = vmatmul.f32.gmra.mxu0 %v1616
      %v1656 = vpop.f32.mrf.mxu0
      %v1657 = vadd.f32 0.0, %v1656
      %1658 = vdwg.mxu0
      %v1659 = vmul.f32 %v1636, %v937
      %v1660 = vmul.f32 %v1639, %v937
      %v1661 = vmul.f32 %v1642, %v937
      %v1662 = vmul.f32 %v1645, %v937
      %v1663 = vmul.f32 %v1648, %v937
      %v1664 = vmul.f32 %v1651, %v937
      %v1665 = vmul.f32 %v1654, %v937
      %v1666 = vmul.f32 %v1657, %v937
      %v1667 = vadd.f32 %v1659, %v948
      %v1668 = vadd.f32 %v1660, %v948
      %v1669 = vadd.f32 %v1661, %v948
      %v1670 = vadd.f32 %v1662, %v948
      %v1671 = vadd.f32 %v1663, %v948
      %v1672 = vadd.f32 %v1664, %v948
      %v1673 = vadd.f32 %v1665, %v948
      %v1674 = vadd.f32 %v1666, %v948
      %v1675 = vxor.u32 %v1667, 2147483648
      %v1676 = vxor.u32 %v1668, 2147483648
      %v1677 = vxor.u32 %v1669, 2147483648
      %v1678 = vxor.u32 %v1670, 2147483648
      %v1679 = vxor.u32 %v1671, 2147483648
      %v1680 = vxor.u32 %v1672, 2147483648
      %v1681 = vxor.u32 %v1673, 2147483648
      %v1682 = vxor.u32 %v1674, 2147483648
      %v1683 = vmul.f32 %v1675, 1.442695
      %v1684 = vpow.pop %v1683
      %v1685 = vmul.f32 %v1676, 1.442695
      %v1686 = vpow.pop %v1685
      %v1687 = vmul.f32 %v1677, 1.442695
      %v1688 = vpow.pop %v1687
      %v1689 = vmul.f32 %v1678, 1.442695
      %v1690 = vpow.pop %v1689
      %v1691 = vmul.f32 %v1679, 1.442695
      %v1692 = vpow.pop %v1691
      %v1693 = vmul.f32 %v1680, 1.442695
      %v1694 = vpow.pop %v1693
      %v1695 = vmul.f32 %v1681, 1.442695
      %v1696 = vpow.pop %v1695
      %v1697 = vmul.f32 %v1682, 1.442695
      %v1698 = vpow.pop %v1697
      %v1699 = vadd.f32 %v1684, 1.0
      %v1700 = vadd.f32 %v1686, 1.0
      %v1701 = vadd.f32 %v1688, 1.0
      %v1702 = vadd.f32 %v1690, 1.0
      %v1703 = vadd.f32 %v1692, 1.0
      %v1704 = vadd.f32 %v1694, 1.0
      %v1705 = vadd.f32 %v1696, 1.0
      %v1706 = vadd.f32 %v1698, 1.0
      %v1707 = vrcp.pop %v1699
      %v1708 = vmul.f32 %v1699, %v1707
      %v1709 = vsub.f32 1.0, %v1708
      %v1710 = vmul.f32 %v1707, %v1709
      %v1711 = vadd.f32 %v1707, %v1710
      %vm1712 = vweird.f32 %v1699
      %vm1713 = vweird.f32 %v1707
      %vm1714 = vmor %vm1712, %vm1713
      %v1715 = vsel %vm1714, %v1707, %v1711
      %v1716 = vand.u32 2147483647, %v1699
      %vm1717 = vcmp.eq.f32.partialorder %v1716, 8.507059e+37
      %v1718 = vand.u32 %v1699, 2147483648
      %v1719 = vor.u32 1.1754944e-38, %v1718
      %v1720 = vsel %vm1717, %v1719, %v1715
      %v1721 = vmul.f32 1.0, %v1720
      %v1722 = vrcp.pop %v1700
      %v1723 = vmul.f32 %v1700, %v1722
      %v1724 = vsub.f32 1.0, %v1723
      %v1725 = vmul.f32 %v1722, %v1724
      %v1726 = vadd.f32 %v1722, %v1725
      %vm1727 = vweird.f32 %v1700
      %vm1728 = vweird.f32 %v1722
      %vm1729 = vmor %vm1727, %vm1728
      %v1730 = vsel %vm1729, %v1722, %v1726
      %v1731 = vand.u32 2147483647, %v1700
      %vm1732 = vcmp.eq.f32.partialorder %v1731, 8.507059e+37
      %v1733 = vand.u32 %v1700, 2147483648
      %v1734 = vor.u32 1.1754944e-38, %v1733
      %v1735 = vsel %vm1732, %v1734, %v1730
      %v1736 = vmul.f32 1.0, %v1735
      %v1737 = vrcp.pop %v1701
      %v1738 = vmul.f32 %v1701, %v1737
      %v1739 = vsub.f32 1.0, %v1738
      %v1740 = vmul.f32 %v1737, %v1739
      %v1741 = vadd.f32 %v1737, %v1740
      %vm1742 = vweird.f32 %v1701
      %vm1743 = vweird.f32 %v1737
      %vm1744 = vmor %vm1742, %vm1743
      %v1745 = vsel %vm1744, %v1737, %v1741
      %v1746 = vand.u32 2147483647, %v1701
      %vm1747 = vcmp.eq.f32.partialorder %v1746, 8.507059e+37
      %v1748 = vand.u32 %v1701, 2147483648
      %v1749 = vor.u32 1.1754944e-38, %v1748
      %v1750 = vsel %vm1747, %v1749, %v1745
      %v1751 = vmul.f32 1.0, %v1750
      %v1752 = vrcp.pop %v1702
      %v1753 = vmul.f32 %v1702, %v1752
      %v1754 = vsub.f32 1.0, %v1753
      %v1755 = vmul.f32 %v1752, %v1754
      %v1756 = vadd.f32 %v1752, %v1755
      %vm1757 = vweird.f32 %v1702
      %vm1758 = vweird.f32 %v1752
      %vm1759 = vmor %vm1757, %vm1758
      %v1760 = vsel %vm1759, %v1752, %v1756
      %v1761 = vand.u32 2147483647, %v1702
      %vm1762 = vcmp.eq.f32.partialorder %v1761, 8.507059e+37
      %v1763 = vand.u32 %v1702, 2147483648
      %v1764 = vor.u32 1.1754944e-38, %v1763
      %v1765 = vsel %vm1762, %v1764, %v1760
      %v1766 = vmul.f32 1.0, %v1765
      %v1767 = vrcp.pop %v1703
      %v1768 = vmul.f32 %v1703, %v1767
      %v1769 = vsub.f32 1.0, %v1768
      %v1770 = vmul.f32 %v1767, %v1769
      %v1771 = vadd.f32 %v1767, %v1770
      %vm1772 = vweird.f32 %v1703
      %vm1773 = vweird.f32 %v1767
      %vm1774 = vmor %vm1772, %vm1773
      %v1775 = vsel %vm1774, %v1767, %v1771
      %v1776 = vand.u32 2147483647, %v1703
      %vm1777 = vcmp.eq.f32.partialorder %v1776, 8.507059e+37
      %v1778 = vand.u32 %v1703, 2147483648
      %v1779 = vor.u32 1.1754944e-38, %v1778
      %v1780 = vsel %vm1777, %v1779, %v1775
      %v1781 = vmul.f32 1.0, %v1780
      %v1782 = vrcp.pop %v1704
      %v1783 = vmul.f32 %v1704, %v1782
      %v1784 = vsub.f32 1.0, %v1783
      %v1785 = vmul.f32 %v1782, %v1784
      %v1786 = vadd.f32 %v1782, %v1785
      %vm1787 = vweird.f32 %v1704
      %vm1788 = vweird.f32 %v1782
      %vm1789 = vmor %vm1787, %vm1788
      %v1790 = vsel %vm1789, %v1782, %v1786
      %v1791 = vand.u32 2147483647, %v1704
      %vm1792 = vcmp.eq.f32.partialorder %v1791, 8.507059e+37
      %v1793 = vand.u32 %v1704, 2147483648
      %v1794 = vor.u32 1.1754944e-38, %v1793
      %v1795 = vsel %vm1792, %v1794, %v1790
      %v1796 = vmul.f32 1.0, %v1795
      %v1797 = vrcp.pop %v1705
      %v1798 = vmul.f32 %v1705, %v1797
      %v1799 = vsub.f32 1.0, %v1798
      %v1800 = vmul.f32 %v1797, %v1799
      %v1801 = vadd.f32 %v1797, %v1800
      %vm1802 = vweird.f32 %v1705
      %vm1803 = vweird.f32 %v1797
      %vm1804 = vmor %vm1802, %vm1803
      %v1805 = vsel %vm1804, %v1797, %v1801
      %v1806 = vand.u32 2147483647, %v1705
      %vm1807 = vcmp.eq.f32.partialorder %v1806, 8.507059e+37
      %v1808 = vand.u32 %v1705, 2147483648
      %v1809 = vor.u32 1.1754944e-38, %v1808
      %v1810 = vsel %vm1807, %v1809, %v1805
      %v1811 = vmul.f32 1.0, %v1810
      %v1812 = vrcp.pop %v1706
      %v1813 = vmul.f32 %v1706, %v1812
      %v1814 = vsub.f32 1.0, %v1813
      %v1815 = vmul.f32 %v1812, %v1814
      %v1816 = vadd.f32 %v1812, %v1815
      %vm1817 = vweird.f32 %v1706
      %vm1818 = vweird.f32 %v1812
      %vm1819 = vmor %vm1817, %vm1818
      %v1820 = vsel %vm1819, %v1812, %v1816
      %v1821 = vand.u32 2147483647, %v1706
      %vm1822 = vcmp.eq.f32.partialorder %v1821, 8.507059e+37
      %v1823 = vand.u32 %v1706, 2147483648
      %v1824 = vor.u32 1.1754944e-38, %v1823
      %v1825 = vsel %vm1822, %v1824, %v1820
      %v1826 = vmul.f32 1.0, %v1825
      %v1827 = vmul.f32 %v1667, %v1721
      %v1828 = vmul.f32 %v1668, %v1736
      %v1829 = vmul.f32 %v1669, %v1751
      %v1830 = vmul.f32 %v1670, %v1766
      %v1831 = vmul.f32 %v1671, %v1781
      %v1832 = vmul.f32 %v1672, %v1796
      %v1833 = vmul.f32 %v1673, %v1811
      %v1834 = vmul.f32 %v1674, %v1826
      %v1835 = vld [vmem:[%s7] sm:$0x7]
      %v1836 = vld [vmem:[%s7 + $0x4] sm:$0x7]
      %v1837 = vld [vmem:[%s7 + $0x8] sm:$0x7]
      %v1838 = vld [vmem:[%s8] sm:$0x1]
      %v1839 = vld [vmem:[%s9] sm:$0x1]
      %v1848 = vrot.slane %v1359, 7
      %v1849 = vrot.slane %v1360, 7
      %v1850 = vrot.slane %v1361, 7
      %v1851 = vrot.slane %v1362, 7
      %v1852 = vrot.slane %v1363, 7
      %v1853 = vrot.slane %v1364, 7
      %v1854 = vrot.slane %v1365, 7
      %v1855 = vrot.slane %v1366, 7
      %v1864 = vsel %vm529, 0.0, %v1848
      %v1865 = vsel %vm529, 0.0, %v1849
      %v1866 = vsel %vm529, 0.0, %v1850
      %v1867 = vsel %vm529, 0.0, %v1851
      %v1868 = vsel %vm529, 0.0, %v1852
      %v1869 = vsel %vm529, 0.0, %v1853
      %v1870 = vsel %vm529, 0.0, %v1854
      %v1871 = vsel %vm529, 0.0, %v1855
      %v1880 = vrot.slane %v1827, 7
      %v1881 = vrot.slane %v1828, 7
      %v1882 = vrot.slane %v1829, 7
      %v1883 = vrot.slane %v1830, 7
      %v1884 = vrot.slane %v1831, 7
      %v1885 = vrot.slane %v1832, 7
      %v1886 = vrot.slane %v1833, 7
      %v1887 = vrot.slane %v1834, 7
      %v1896 = vsel %vm529, 0.0, %v1880
      %v1897 = vsel %vm529, 0.0, %v1881
      %v1898 = vsel %vm529, 0.0, %v1882
      %v1899 = vsel %vm529, 0.0, %v1883
      %v1900 = vsel %vm529, 0.0, %v1884
      %v1901 = vsel %vm529, 0.0, %v1885
      %v1902 = vsel %vm529, 0.0, %v1886
      %v1903 = vsel %vm529, 0.0, %v1887
      %v1904 = vperm.slane %v1836, 1
      %v1905 = vmul.f32 %v1110, %v1904
      %v1906 = vmul.f32 %v1111, %v1904
      %v1907 = vmul.f32 %v1112, %v1904
      %v1908 = vmul.f32 %v1113, %v1904
      %v1909 = vmul.f32 %v1114, %v1904
      %v1910 = vmul.f32 %v1115, %v1904
      %v1911 = vmul.f32 %v1116, %v1904
      %v1912 = vmul.f32 %v1117, %v1904
      %v1913 = vperm.slane %v1836, 0
      %v1914 = vmul.f32 %v1864, %v1913
      %v1915 = vmul.f32 %v1865, %v1913
      %v1916 = vmul.f32 %v1866, %v1913
      %v1917 = vmul.f32 %v1867, %v1913
      %v1918 = vmul.f32 %v1868, %v1913
      %v1919 = vmul.f32 %v1869, %v1913
      %v1920 = vmul.f32 %v1870, %v1913
      %v1921 = vmul.f32 %v1871, %v1913
      %v1922 = vadd.f32 %v1905, %v1914
      %v1923 = vadd.f32 %v1906, %v1915
      %v1924 = vadd.f32 %v1907, %v1916
      %v1925 = vadd.f32 %v1908, %v1917
      %v1926 = vadd.f32 %v1909, %v1918
      %v1927 = vadd.f32 %v1910, %v1919
      %v1928 = vadd.f32 %v1911, %v1920
      %v1929 = vadd.f32 %v1912, %v1921
      %v1930 = vperm.slane %v1836, 2
      %v1931 = vmul.f32 %v1359, %v1930
      %v1932 = vmul.f32 %v1360, %v1930
      %v1933 = vmul.f32 %v1361, %v1930
      %v1934 = vmul.f32 %v1362, %v1930
      %v1935 = vmul.f32 %v1363, %v1930
      %v1936 = vmul.f32 %v1364, %v1930
      %v1937 = vmul.f32 %v1365, %v1930
      %v1938 = vmul.f32 %v1366, %v1930
      %v1939 = vadd.f32 %v1922, %v1931
      %v1940 = vadd.f32 %v1923, %v1932
      %v1941 = vadd.f32 %v1924, %v1933
      %v1942 = vadd.f32 %v1925, %v1934
      %v1943 = vadd.f32 %v1926, %v1935
      %v1944 = vadd.f32 %v1927, %v1936
      %v1945 = vadd.f32 %v1928, %v1937
      %v1946 = vadd.f32 %v1929, %v1938
      %v1947 = vperm.slane %v1835, 1
      %v1948 = vmul.f32 %v1947, 0.0
      %v1949 = vmul.f32 %v1592, %v1947
      %v1950 = vmul.f32 %v1593, %v1947
      %v1951 = vmul.f32 %v1594, %v1947
      %v1952 = vmul.f32 %v1595, %v1947
      %v1953 = vmul.f32 %v1596, %v1947
      %v1954 = vmul.f32 %v1597, %v1947
      %v1955 = vmul.f32 %v1598, %v1947
      %v1956 = vadd.f32 %v1939, %v1948
      %v1957 = vadd.f32 %v1940, %v1949
      %v1958 = vadd.f32 %v1941, %v1950
      %v1959 = vadd.f32 %v1942, %v1951
      %v1960 = vadd.f32 %v1943, %v1952
      %v1961 = vadd.f32 %v1944, %v1953
      %v1962 = vadd.f32 %v1945, %v1954
      %v1963 = vadd.f32 %v1946, %v1955
      %v1964 = vperm.slane %v1837, 1
      %v1965 = vmul.f32 %v1592, %v1964
      %v1966 = vmul.f32 %v1593, %v1964
      %v1967 = vmul.f32 %v1594, %v1964
      %v1968 = vmul.f32 %v1595, %v1964
      %v1969 = vmul.f32 %v1596, %v1964
      %v1970 = vmul.f32 %v1597, %v1964
      %v1971 = vmul.f32 %v1598, %v1964
      %v1972 = vmul.f32 %v1599, %v1964
      %v1973 = vadd.f32 %v1956, %v1965
      %v1974 = vadd.f32 %v1957, %v1966
      %v1975 = vadd.f32 %v1958, %v1967
      %v1976 = vadd.f32 %v1959, %v1968
      %v1977 = vadd.f32 %v1960, %v1969
      %v1978 = vadd.f32 %v1961, %v1970
      %v1979 = vadd.f32 %v1962, %v1971
      %v1980 = vadd.f32 %v1963, %v1972
      %v1981 = vperm.slane %v1835, 0
      %v1982 = vmul.f32 %v624, %v1981
      %v1983 = vmul.f32 %v1896, %v1981
      %v1984 = vmul.f32 %v1897, %v1981
      %v1985 = vmul.f32 %v1898, %v1981
      %v1986 = vmul.f32 %v1899, %v1981
      %v1987 = vmul.f32 %v1900, %v1981
      %v1988 = vmul.f32 %v1901, %v1981
      %v1989 = vmul.f32 %v1902, %v1981
      %v1990 = vadd.f32 %v1973, %v1982
      %v1991 = vadd.f32 %v1974, %v1983
      %v1992 = vadd.f32 %v1975, %v1984
      %v1993 = vadd.f32 %v1976, %v1985
      %v1994 = vadd.f32 %v1977, %v1986
      %v1995 = vadd.f32 %v1978, %v1987
      %v1996 = vadd.f32 %v1979, %v1988
      %v1997 = vadd.f32 %v1980, %v1989
      %v1998 = vperm.slane %v1835, 2
      %v1999 = vmul.f32 %v1998, 0.0
      %v2000 = vmul.f32 %v1827, %v1998
      %v2001 = vmul.f32 %v1828, %v1998
      %v2002 = vmul.f32 %v1829, %v1998
      %v2003 = vmul.f32 %v1830, %v1998
      %v2004 = vmul.f32 %v1831, %v1998
      %v2005 = vmul.f32 %v1832, %v1998
      %v2006 = vmul.f32 %v1833, %v1998
      %v2007 = vadd.f32 %v1990, %v1999
      %v2008 = vadd.f32 %v1991, %v2000
      %v2009 = vadd.f32 %v1992, %v2001
      %v2010 = vadd.f32 %v1993, %v2002
      %v2011 = vadd.f32 %v1994, %v2003
      %v2012 = vadd.f32 %v1995, %v2004
      %v2013 = vadd.f32 %v1996, %v2005
      %v2014 = vadd.f32 %v1997, %v2006
      %v2015 = vperm.slane %v1837, 0
      %v2016 = vmul.f32 %v1896, %v2015
      %v2017 = vmul.f32 %v1897, %v2015
      %v2018 = vmul.f32 %v1898, %v2015
      %v2019 = vmul.f32 %v1899, %v2015
      %v2020 = vmul.f32 %v1900, %v2015
      %v2021 = vmul.f32 %v1901, %v2015
      %v2022 = vmul.f32 %v1902, %v2015
      %v2023 = vmul.f32 %v1903, %v2015
      %v2024 = vadd.f32 %v2007, %v2016
      %v2025 = vadd.f32 %v2008, %v2017
      %v2026 = vadd.f32 %v2009, %v2018
      %v2027 = vadd.f32 %v2010, %v2019
      %v2028 = vadd.f32 %v2011, %v2020
      %v2029 = vadd.f32 %v2012, %v2021
      %v2030 = vadd.f32 %v2013, %v2022
      %v2031 = vadd.f32 %v2014, %v2023
      %v2032 = vperm.slane %v1837, 2
      %v2033 = vmul.f32 %v1827, %v2032
      %v2034 = vmul.f32 %v1828, %v2032
      %v2035 = vmul.f32 %v1829, %v2032
      %v2036 = vmul.f32 %v1830, %v2032
      %v2037 = vmul.f32 %v1831, %v2032
      %v2038 = vmul.f32 %v1832, %v2032
      %v2039 = vmul.f32 %v1833, %v2032
      %v2040 = vmul.f32 %v1834, %v2032
      %v2041 = vadd.f32 %v2024, %v2033
      %v2042 = vadd.f32 %v2025, %v2034
      %v2043 = vadd.f32 %v2026, %v2035
      %v2044 = vadd.f32 %v2027, %v2036
      %v2045 = vadd.f32 %v2028, %v2037
      %v2046 = vadd.f32 %v2029, %v2038
      %v2047 = vadd.f32 %v2030, %v2039
      %v2048 = vadd.f32 %v2031, %v2040
      %v2050 = vperm.slane %v1838, 0
      %v2052 = vmul.f32 %v2041, %v2050
      %v2053 = vmul.f32 %v2042, %v2050
      %v2054 = vmul.f32 %v2043, %v2050
      %v2055 = vmul.f32 %v2044, %v2050
      %v2056 = vmul.f32 %v2045, %v2050
      %v2057 = vmul.f32 %v2046, %v2050
      %v2058 = vmul.f32 %v2047, %v2050
      %v2059 = vmul.f32 %v2048, %v2050
      %v2061 = vperm.slane %v1839, 0
      %v2063 = vadd.f32 %v2052, %v2061
      %v2064 = vadd.f32 %v2053, %v2061
      %v2065 = vadd.f32 %v2054, %v2061
      %v2066 = vadd.f32 %v2055, %v2061
      %v2067 = vadd.f32 %v2056, %v2061
      %v2068 = vadd.f32 %v2057, %v2061
      %v2069 = vadd.f32 %v2058, %v2061
      %v2070 = vadd.f32 %v2059, %v2061
      %v2071 = vld [vmem:[%s10] sm:$0xf]
      %v2072 = vld [vmem:[%s11] sm:$0xf]
      %v2074 = vsel %vm874, %v2063, 0
      %v2077 = vsel %vm874, %v2064, 0
      %v2080 = vsel %vm874, %v2065, 0
      %v2083 = vsel %vm874, %v2066, 0
      %v2086 = vsel %vm874, %v2067, 0
      %v2089 = vsel %vm874, %v2068, 0
      %v2092 = vsel %vm874, %v2069, 0
      %v2095 = vsel %vm874, %v2070, 0
      %v2098 = vsel %vm891, %v2072, 0
      %2100 = vmatpush.msra.mxu0 0.0
      %2101 = vmatpush.msra.mxu0 0.0
      %2102 = vmatpush.msra.mxu0 0.0
      %2103 = vmatpush.msra.mxu0 0.0
      %2104 = vmatpush.msra.mxu0 0.0
      %2105 = vmatpush.msra.mxu0 0.0
      %2106 = vmatpush.msra.mxu0 0.0
      %2107 = vmatpush.msra.mxu0 0.0
      %2108 = vmatpush.msra.mxu0 0.0
      %2109 = vmatpush.msra.mxu0 0.0
      %2110 = vmatpush.msra.mxu0 0.0
      %2111 = vmatpush.msra.mxu0 0.0
      %2112 = vmatpush.msra.mxu0 0.0
      %2113 = vmatpush.msra.mxu0 0.0
      %2114 = vmatpush.msra.mxu0 0.0
      %2115 = vmatpush.msra.mxu0 %v2098
      %2116 = vmatmul.f32.gmra.mxu0 %v2074
      %v2117 = vpop.f32.mrf.mxu0
      %v2118 = vadd.f32 0.0, %v2117
      %2119 = vmatmul.f32.gmra.mxu0 %v2077
      %v2120 = vpop.f32.mrf.mxu0
      %v2121 = vadd.f32 0.0, %v2120
      %2122 = vmatmul.f32.gmra.mxu0 %v2080
      %v2123 = vpop.f32.mrf.mxu0
      %v2124 = vadd.f32 0.0, %v2123
      %2125 = vmatmul.f32.gmra.mxu0 %v2083
      %v2126 = vpop.f32.mrf.mxu0
      %v2127 = vadd.f32 0.0, %v2126
      %2128 = vmatmul.f32.gmra.mxu0 %v2086
      %v2129 = vpop.f32.mrf.mxu0
      %v2130 = vadd.f32 0.0, %v2129
      %2131 = vmatmul.f32.gmra.mxu0 %v2089
      %v2132 = vpop.f32.mrf.mxu0
      %v2133 = vadd.f32 0.0, %v2132
      %2134 = vmatmul.f32.gmra.mxu0 %v2092
      %v2135 = vpop.f32.mrf.mxu0
      %v2136 = vadd.f32 0.0, %v2135
      %2137 = vmatmul.f32.gmra.mxu0 %v2095
      %v2138 = vpop.f32.mrf.mxu0
      %v2139 = vadd.f32 0.0, %v2138
      %2140 = vdwg.mxu0
      %v2142 = vsel %vm874, %v863, 0
      %v2145 = vsel %vm874, %v864, 0
      %v2148 = vsel %vm874, %v865, 0
      %v2151 = vsel %vm874, %v866, 0
      %v2154 = vsel %vm874, %v867, 0
      %v2157 = vsel %vm874, %v868, 0
      %v2160 = vsel %vm874, %v869, 0
      %v2163 = vsel %vm874, %v870, 0
      %v2166 = vsel %vm891, %v2071, 0
      %2168 = vmatpush.msra.mxu0 0.0
      %2169 = vmatpush.msra.mxu0 0.0
      %2170 = vmatpush.msra.mxu0 0.0
      %2171 = vmatpush.msra.mxu0 0.0
      %2172 = vmatpush.msra.mxu0 0.0
      %2173 = vmatpush.msra.mxu0 0.0
      %2174 = vmatpush.msra.mxu0 0.0
      %2175 = vmatpush.msra.mxu0 0.0
      %2176 = vmatpush.msra.mxu0 0.0
      %2177 = vmatpush.msra.mxu0 0.0
      %2178 = vmatpush.msra.mxu0 0.0
      %2179 = vmatpush.msra.mxu0 0.0
      %2180 = vmatpush.msra.mxu0 0.0
      %2181 = vmatpush.msra.mxu0 0.0
      %2182 = vmatpush.msra.mxu0 0.0
      %2183 = vmatpush.msra.mxu0 %v2166
      %2184 = vmatmul.f32.gmra.mxu0 %v2142
      %v2185 = vpop.f32.mrf.mxu0
      %v2186 = vadd.f32 %v2118, %v2185
      %2187 = vmatmul.f32.gmra.mxu0 %v2145
      %v2188 = vpop.f32.mrf.mxu0
      %v2189 = vadd.f32 %v2121, %v2188
      %2190 = vmatmul.f32.gmra.mxu0 %v2148
      %v2191 = vpop.f32.mrf.mxu0
      %v2192 = vadd.f32 %v2124, %v2191
      %2193 = vmatmul.f32.gmra.mxu0 %v2151
      %v2194 = vpop.f32.mrf.mxu0
      %v2195 = vadd.f32 %v2127, %v2194
      %2196 = vmatmul.f32.gmra.mxu0 %v2154
      %v2197 = vpop.f32.mrf.mxu0
      %v2198 = vadd.f32 %v2130, %v2197
      %2199 = vmatmul.f32.gmra.mxu0 %v2157
      %v2200 = vpop.f32.mrf.mxu0
      %v2201 = vadd.f32 %v2133, %v2200
      %2202 = vmatmul.f32.gmra.mxu0 %v2160
      %v2203 = vpop.f32.mrf.mxu0
      %v2204 = vadd.f32 %v2136, %v2203
      %2205 = vmatmul.f32.gmra.mxu0 %v2163
      %v2206 = vpop.f32.mrf.mxu0
      %v2207 = vadd.f32 %v2139, %v2206
      %2208 = vdwg.mxu0
      %v2209 = vld [vmem:[%s12] sm:$0x1]
      %v2211 = vperm.slane %v2209, 0
      %v2213 = vmul.f32 %v2186, %v2211
      %v2214 = vmul.f32 %v2189, %v2211
      %v2215 = vmul.f32 %v2192, %v2211
      %v2216 = vmul.f32 %v2195, %v2211
      %v2217 = vmul.f32 %v2198, %v2211
      %v2218 = vmul.f32 %v2201, %v2211
      %v2219 = vmul.f32 %v2204, %v2211
      %v2220 = vmul.f32 %v2207, %v2211
      %v2221 = vld [vmem:[%s13] sm:$0x1]
      %v2223 = vperm.slane %v2221, 0
      %v2225 = vadd.f32 %v2213, %v2223
      %v2226 = vadd.f32 %v2214, %v2223
      %v2227 = vadd.f32 %v2215, %v2223
      %v2228 = vadd.f32 %v2216, %v2223
      %v2229 = vadd.f32 %v2217, %v2223
      %v2230 = vadd.f32 %v2218, %v2223
      %v2231 = vadd.f32 %v2219, %v2223
      %v2232 = vadd.f32 %v2220, %v2223
      %v2233 = vxor.u32 %v2225, 2147483648
      %v2234 = vxor.u32 %v2226, 2147483648
      %v2235 = vxor.u32 %v2227, 2147483648
      %v2236 = vxor.u32 %v2228, 2147483648
      %v2237 = vxor.u32 %v2229, 2147483648
      %v2238 = vxor.u32 %v2230, 2147483648
      %v2239 = vxor.u32 %v2231, 2147483648
      %v2240 = vxor.u32 %v2232, 2147483648
      %v2241 = vmul.f32 %v2233, 1.442695
      %v2242 = vpow.pop %v2241
      %v2243 = vmul.f32 %v2234, 1.442695
      %v2244 = vpow.pop %v2243
      %v2245 = vmul.f32 %v2235, 1.442695
      %v2246 = vpow.pop %v2245
      %v2247 = vmul.f32 %v2236, 1.442695
      %v2248 = vpow.pop %v2247
      %v2249 = vmul.f32 %v2237, 1.442695
      %v2250 = vpow.pop %v2249
      %v2251 = vmul.f32 %v2238, 1.442695
      %v2252 = vpow.pop %v2251
      %v2253 = vmul.f32 %v2239, 1.442695
      %v2254 = vpow.pop %v2253
      %v2255 = vmul.f32 %v2240, 1.442695
      %v2256 = vpow.pop %v2255
      %v2257 = vadd.f32 %v2242, 1.0
      %v2258 = vadd.f32 %v2244, 1.0
      %v2259 = vadd.f32 %v2246, 1.0
      %v2260 = vadd.f32 %v2248, 1.0
      %v2261 = vadd.f32 %v2250, 1.0
      %v2262 = vadd.f32 %v2252, 1.0
      %v2263 = vadd.f32 %v2254, 1.0
      %v2264 = vadd.f32 %v2256, 1.0
      %v2265 = vrcp.pop %v2257
      %v2266 = vmul.f32 %v2257, %v2265
      %v2267 = vsub.f32 1.0, %v2266
      %v2268 = vmul.f32 %v2265, %v2267
      %v2269 = vadd.f32 %v2265, %v2268
      %vm2270 = vweird.f32 %v2257
      %vm2271 = vweird.f32 %v2265
      %vm2272 = vmor %vm2270, %vm2271
      %v2273 = vsel %vm2272, %v2265, %v2269
      %v2274 = vand.u32 2147483647, %v2257
      %vm2275 = vcmp.eq.f32.partialorder %v2274, 8.507059e+37
      %v2276 = vand.u32 %v2257, 2147483648
      %v2277 = vor.u32 1.1754944e-38, %v2276
      %v2278 = vsel %vm2275, %v2277, %v2273
      %v2279 = vmul.f32 1.0, %v2278
      %v2280 = vrcp.pop %v2258
      %v2281 = vmul.f32 %v2258, %v2280
      %v2282 = vsub.f32 1.0, %v2281
      %v2283 = vmul.f32 %v2280, %v2282
      %v2284 = vadd.f32 %v2280, %v2283
      %vm2285 = vweird.f32 %v2258
      %vm2286 = vweird.f32 %v2280
      %vm2287 = vmor %vm2285, %vm2286
      %v2288 = vsel %vm2287, %v2280, %v2284
      %v2289 = vand.u32 2147483647, %v2258
      %vm2290 = vcmp.eq.f32.partialorder %v2289, 8.507059e+37
      %v2291 = vand.u32 %v2258, 2147483648
      %v2292 = vor.u32 1.1754944e-38, %v2291
      %v2293 = vsel %vm2290, %v2292, %v2288
      %v2294 = vmul.f32 1.0, %v2293
      %v2295 = vrcp.pop %v2259
      %v2296 = vmul.f32 %v2259, %v2295
      %v2297 = vsub.f32 1.0, %v2296
      %v2298 = vmul.f32 %v2295, %v2297
      %v2299 = vadd.f32 %v2295, %v2298
      %vm2300 = vweird.f32 %v2259
      %vm2301 = vweird.f32 %v2295
      %vm2302 = vmor %vm2300, %vm2301
      %v2303 = vsel %vm2302, %v2295, %v2299
      %v2304 = vand.u32 2147483647, %v2259
      %vm2305 = vcmp.eq.f32.partialorder %v2304, 8.507059e+37
      %v2306 = vand.u32 %v2259, 2147483648
      %v2307 = vor.u32 1.1754944e-38, %v2306
      %v2308 = vsel %vm2305, %v2307, %v2303
      %v2309 = vmul.f32 1.0, %v2308
      %v2310 = vrcp.pop %v2260
      %v2311 = vmul.f32 %v2260, %v2310
      %v2312 = vsub.f32 1.0, %v2311
      %v2313 = vmul.f32 %v2310, %v2312
      %v2314 = vadd.f32 %v2310, %v2313
      %vm2315 = vweird.f32 %v2260
      %vm2316 = vweird.f32 %v2310
      %vm2317 = vmor %vm2315, %vm2316
      %v2318 = vsel %vm2317, %v2310, %v2314
      %v2319 = vand.u32 2147483647, %v2260
      %vm2320 = vcmp.eq.f32.partialorder %v2319, 8.507059e+37
      %v2321 = vand.u32 %v2260, 2147483648
      %v2322 = vor.u32 1.1754944e-38, %v2321
      %v2323 = vsel %vm2320, %v2322, %v2318
      %v2324 = vmul.f32 1.0, %v2323
      %v2325 = vrcp.pop %v2261
      %v2326 = vmul.f32 %v2261, %v2325
      %v2327 = vsub.f32 1.0, %v2326
      %v2328 = vmul.f32 %v2325, %v2327
      %v2329 = vadd.f32 %v2325, %v2328
      %vm2330 = vweird.f32 %v2261
      %vm2331 = vweird.f32 %v2325
      %vm2332 = vmor %vm2330, %vm2331
      %v2333 = vsel %vm2332, %v2325, %v2329
      %v2334 = vand.u32 2147483647, %v2261
      %vm2335 = vcmp.eq.f32.partialorder %v2334, 8.507059e+37
      %v2336 = vand.u32 %v2261, 2147483648
      %v2337 = vor.u32 1.1754944e-38, %v2336
      %v2338 = vsel %vm2335, %v2337, %v2333
      %v2339 = vmul.f32 1.0, %v2338
      %v2340 = vrcp.pop %v2262
      %v2341 = vmul.f32 %v2262, %v2340
      %v2342 = vsub.f32 1.0, %v2341
      %v2343 = vmul.f32 %v2340, %v2342
      %v2344 = vadd.f32 %v2340, %v2343
      %vm2345 = vweird.f32 %v2262
      %vm2346 = vweird.f32 %v2340
      %vm2347 = vmor %vm2345, %vm2346
      %v2348 = vsel %vm2347, %v2340, %v2344
      %v2349 = vand.u32 2147483647, %v2262
      %vm2350 = vcmp.eq.f32.partialorder %v2349, 8.507059e+37
      %v2351 = vand.u32 %v2262, 2147483648
      %v2352 = vor.u32 1.1754944e-38, %v2351
      %v2353 = vsel %vm2350, %v2352, %v2348
      %v2354 = vmul.f32 1.0, %v2353
      %v2355 = vrcp.pop %v2263
      %v2356 = vmul.f32 %v2263, %v2355
      %v2357 = vsub.f32 1.0, %v2356
      %v2358 = vmul.f32 %v2355, %v2357
      %v2359 = vadd.f32 %v2355, %v2358
      %vm2360 = vweird.f32 %v2263
      %vm2361 = vweird.f32 %v2355
      %vm2362 = vmor %vm2360, %vm2361
      %v2363 = vsel %vm2362, %v2355, %v2359
      %v2364 = vand.u32 2147483647, %v2263
      %vm2365 = vcmp.eq.f32.partialorder %v2364, 8.507059e+37
      %v2366 = vand.u32 %v2263, 2147483648
      %v2367 = vor.u32 1.1754944e-38, %v2366
      %v2368 = vsel %vm2365, %v2367, %v2363
      %v2369 = vmul.f32 1.0, %v2368
      %v2370 = vrcp.pop %v2264
      %v2371 = vmul.f32 %v2264, %v2370
      %v2372 = vsub.f32 1.0, %v2371
      %v2373 = vmul.f32 %v2370, %v2372
      %v2374 = vadd.f32 %v2370, %v2373
      %vm2375 = vweird.f32 %v2264
      %vm2376 = vweird.f32 %v2370
      %vm2377 = vmor %vm2375, %vm2376
      %v2378 = vsel %vm2377, %v2370, %v2374
      %v2379 = vand.u32 2147483647, %v2264
      %vm2380 = vcmp.eq.f32.partialorder %v2379, 8.507059e+37
      %v2381 = vand.u32 %v2264, 2147483648
      %v2382 = vor.u32 1.1754944e-38, %v2381
      %v2383 = vsel %vm2380, %v2382, %v2378
      %v2384 = vmul.f32 1.0, %v2383
      %v2385 = vmul.f32 %v2225, %v2279
      %v2386 = vmul.f32 %v2226, %v2294
      %v2387 = vmul.f32 %v2227, %v2309
      %v2388 = vmul.f32 %v2228, %v2324
      %v2389 = vmul.f32 %v2229, %v2339
      %v2390 = vmul.f32 %v2230, %v2354
      %v2391 = vmul.f32 %v2231, %v2369
      %v2392 = vmul.f32 %v2232, %v2384
      %vm2393 = vcmask 64512
      %2394 = vst.msk [vmem:[%s467] sm:$0xff] %vm2393, %v2385
      %2395 = vst.msk [vmem:[%s467 + $0x8] sm:$0xff] %vm2393, %v2386
      %2396 = vst.msk [vmem:[%s467 + $0x10] sm:$0xff] %vm2393, %v2387
      %2397 = vst.msk [vmem:[%s467 + $0x18] sm:$0xff] %vm2393, %v2388
      %2398 = vst.msk [vmem:[%s467 + $0x20] sm:$0xff] %vm2393, %v2389
      %2399 = vst.msk [vmem:[%s467 + $0x28] sm:$0xff] %vm2393, %v2390
      %2400 = vst.msk [vmem:[%s467 + $0x30] sm:$0xff] %vm2393, %v2391
      %2401 = vst.msk [vmem:[%s467 + $0x38] sm:$0xff] %vm2393, %v2392
      %p2402 = scmp.lt.s32.totalorder %s25, 1
      %s2403 = scalar_select %p2402, %s25, 1
      %s2404 = smul.addr %s2403, 8
      %s2405 = smul.addr %s2404, 8
      %s2406 = scalar_lea.vmem %s14, %s2405
      // Predicated region
      $region77: #{residual_downsample.1} parent=75 // pred_check
        %p2407 = pneg %p342
      $region78: #{residual_downsample.1} parent=75 // pred_check_branch
        %2409 = sbr.rel (%p2407) target = $region80
      $region79: #{residual_downsample.1} parent=75 // pred_region
        _
      $region80: #{residual_downsample.1} parent=75 // pred_fallthru
        _
    $region76: #{residual_downsample.1} parent=5 // pred_fallthru
      _
    %p2410 = scmp.le.s32.totalorder 2, %s20
    // Predicated region
    $region81: #{residual_downsample.1} parent=5 // pred_check
      %p2411 = pneg %p2410
    $region82: #{residual_downsample.1} parent=5 // pred_check_branch
      %2413 = sbr.rel (%p2411) target = $region84
    $region83: #{residual_downsample.1} parent=5 // pred_region
      %s2414 = ssub.s32 %s20, 2
      // Predicated region
      $region85: #{residual_downsample.1} parent=83 // pred_check
        %p2415 = pneg %p348
      $region86: #{residual_downsample.1} parent=83 // pred_check_branch
        %2417 = sbr.rel (%p2415) target = $region88
      $region87: #{residual_downsample.1} parent=83 // pred_region
        %p2418 = scmp.lt.s32.totalorder %s26, 1
        %s2419 = scalar_select %p2418, %s26, 1
        %s2420 = smul.addr %s2419, 8
        %s2421 = smul.addr %s2420, 8
        %s2422 = scalar_lea.vmem %s14, %s2421
      $region88: #{residual_downsample.1} parent=83 // pred_fallthru
        _
    $region84: #{residual_downsample.1} parent=5 // pred_fallthru
      _
  $region6: #{residual_downsample.1} parent=0 // loop_footer
    %s24 = sadd.s32 1, %s20
  $region7: #{residual_downsample.1} parent=0 // loop_footer_branch
    %19 = sbr.rel target = $region3
  $region8: #{residual_downsample.1} parent=0 // loop_exit
    _

</llo_original>
